<compile_context>
chip_gen: v6e
topology: v6e:2x2x1
jax: 0.10.0
libtpu: 0.0.40
codegen_flags: <defaults>
</compile_context>

<pallas_src>
import jax
import jax.numpy as jnp
import numpy as np
from jax.experimental import pallas as pl
from jax.experimental.pallas import tpu as pltpu

IMG = 32          # LeNet geometry: 3x32x32 input -> 16*5*5 = 400 flatten
NUM_CLASSES = 10
NPAD = 128        # lane-dense padded class dim


# ------------------------------ fused kernel --------------------------------

def _lenet_kernel(x_ref, w1_ref, b1_ref, pr1_ref, pc1_ref,
                  w2_ref, b2_ref, pr2_ref, pc2_ref,
                  wl1_ref, bl1_ref, wl2_ref, bl2_ref, wl3_ref, bl3_ref,
                  o_ref):
    f32 = jnp.float32
    bf16 = jnp.bfloat16

    x = x_ref[0]                                       # (32, 32*3) f32, layout [h, w*C+c]

    # ---- conv1 + bias + relu: 5 row-Toeplitz matmuls over kh ----------------
    kh1 = w1_ref.shape[0]
    oh1 = x.shape[0] - kh1 + 1                         # 28
    acc1 = jnp.dot(x[0:oh1, :].astype(bf16), w1_ref[0],
                   preferred_element_type=f32)
    for kh in range(1, kh1):
        acc1 = acc1 + jnp.dot(x[kh:kh + oh1, :].astype(bf16), w1_ref[kh],
                              preferred_element_type=f32)
    a1 = jnp.maximum(acc1 + b1_ref[...], 0.0)          # (28, 28*6)

    # ---- avgpool1 as pooling matmuls: PR1 @ a1 @ PC1 ------------------------
    p1 = jnp.dot(
        jnp.dot(pr1_ref[...], a1.astype(bf16),
                preferred_element_type=f32).astype(bf16),
        pc1_ref[...], preferred_element_type=f32)      # (14, 14*6)

    # ---- conv2 + bias + relu -------------------------------------------------
    kh2 = w2_ref.shape[0]
    oh2 = p1.shape[0] - kh2 + 1                        # 10
    acc2 = jnp.dot(p1[0:oh2, :].astype(bf16), w2_ref[0],
                   preferred_element_type=f32)
    for kh in range(1, kh2):
        acc2 = acc2 + jnp.dot(p1[kh:kh + oh2, :].astype(bf16), w2_ref[kh],
                              preferred_element_type=f32)
    a2 = jnp.maximum(acc2 + b2_ref[...], 0.0)          # (10, 10*16)

    # ---- avgpool2 ------------------------------------------------------------
    p2 = jnp.dot(
        jnp.dot(pr2_ref[...], a2.astype(bf16),
                preferred_element_type=f32).astype(bf16),
        pc2_ref[...], preferred_element_type=f32)      # (5, 5*16)

    # ---- fc1 + relu (torch flatten order folded into wl1 host-side) ---------
    nh = p2.shape[0]                                   # 5
    f1 = jnp.dot(p2[0:1, :].astype(bf16), wl1_ref[0], preferred_element_type=f32)
    for h in range(1, nh):
        f1 = f1 + jnp.dot(p2[h:h + 1, :].astype(bf16), wl1_ref[h],
                          preferred_element_type=f32)
    f1 = jnp.maximum(f1 + bl1_ref[...], 0.0)           # (1, 120)

    # ---- fc2 + relu ----------------------------------------------------------
    f2 = jnp.dot(f1.astype(bf16), wl2_ref[...],
                 preferred_element_type=f32) + bl2_ref[...]
    f2 = jnp.maximum(f2, 0.0)                          # (1, 84)

    # ---- fc3 + softmax over 128 padded lanes (pad bias = -1e30 -> exp == 0) --
    logits = jnp.dot(f2.astype(bf16), wl3_ref[...],
                     preferred_element_type=f32) + bl3_ref[...]   # (1, 128)
    m = jnp.max(logits, axis=1, keepdims=True)
    e = jnp.exp(logits - m)
    s = jnp.sum(e, axis=1, keepdims=True)
    probs = e * pl.reciprocal(s, approx=True)
    o_ref[0] = probs.astype(o_ref.dtype)


# --------------------------- host-side weight repack -------------------------

def prepare_params(params):
    """One-time repack of PyTorch-layout LeNet params into matmul constants."""
    f32 = np.float32

    def toeplitz(w, w_in):
        # w: (OC, C, KH, KW) -> (KH, w_in*C, (w_in-KW+1)*OC) row-Toeplitz blocks
        oc, c, kh, kw = w.shape
        ow = w_in - kw + 1
        t = np.zeros((kh, w_in * c, ow * oc), f32)
        wt = np.transpose(np.asarray(w, f32), (2, 3, 1, 0))      # (kh, kw, c, oc)
        for i in range(kh):
            for j in range(kw):
                for o in range(ow):
                    t[i, (o + j) * c:(o + j + 1) * c, o * oc:(o + 1) * oc] = wt[i, j]
        return t

    def pool_rows(h):                                  # (h//2, h), entries 0.5
        m = np.zeros((h // 2, h), f32)
        for i in range(h // 2):
            m[i, 2 * i] = 0.5
            m[i, 2 * i + 1] = 0.5
        return m

    def pool_cols(w, c):                               # (w*c, (w//2)*c), entries 0.5
        m = np.zeros((w * c, (w // 2) * c), f32)
        for i in range(w // 2):
            for d in range(2):
                for ch in range(c):
                    m[(2 * i + d) * c + ch, i * c + ch] = 0.5
        return m

    w1 = np.asarray(params["conv1_w"], f32)            # (6, 3, 5, 5)
    w2 = np.asarray(params["conv2_w"], f32)            # (16, 6, 5, 5)
    l1w = np.asarray(params["l1_w"], f32)              # (120, 400)
    l2w = np.asarray(params["l2_w"], f32)              # (84, 120)
    l3w = np.asarray(params["l3_w"], f32)              # (10, 84)
    oc1 = w1.shape[0]
    oc2 = w2.shape[0]

    ow1 = IMG - 4                                      # 28
    w1t = toeplitz(w1, IMG)                            # (5, 96, 168)
    b1t = np.tile(np.asarray(params["conv1_b"], f32), ow1)[None, :]   # (1, 168)
    pr1 = pool_rows(ow1)                               # (14, 28)
    pc1 = pool_cols(ow1, oc1)                          # (168, 84)

    h2 = ow1 // 2                                      # 14
    ow2 = h2 - 4                                       # 10
    w2t = toeplitz(w2, h2)                             # (5, 84, 160)
    b2t = np.tile(np.asarray(params["conv2_b"], f32), ow2)[None, :]   # (1, 160)
    pr2 = pool_rows(ow2)                               # (5, 10)
    pc2 = pool_cols(ow2, oc2)                          # (160, 80)

    h3 = ow2 // 2                                      # 5
    # torch flattens (C=16, H=5, W=5) channel-major; our act layout is [h, w*16+c]
    wl1 = np.zeros((h3, h3 * oc2, l1w.shape[0]), f32)  # (5, 80, 120)
    for h in range(h3):
        for w in range(h3):
            for ch in range(oc2):
                wl1[h, w * oc2 + ch, :] = l1w[:, ch * h3 * h3 + h * h3 + w]
    bl1 = np.asarray(params["l1_b"], f32)[None, :]

    wl2 = l2w.T                                        # (120, 84)
    bl2 = np.asarray(params["l2_b"], f32)[None, :]

    wl3 = np.zeros((l3w.shape[1], NPAD), f32)          # (84, 128)
    wl3[:, :NUM_CLASSES] = l3w.T
    bl3 = np.full((1, NPAD), -1e30, f32)               # padded lanes get -inf-ish bias
    bl3[0, :NUM_CLASSES] = np.asarray(params["l3_b"], f32)

    bf16 = jnp.bfloat16
    return (
        jnp.asarray(w1t, bf16), jnp.asarray(b1t), jnp.asarray(pr1, bf16),
        jnp.asarray(pc1, bf16), jnp.asarray(w2t, bf16), jnp.asarray(b2t),
        jnp.asarray(pr2, bf16), jnp.asarray(pc2, bf16), jnp.asarray(wl1, bf16),
        jnp.asarray(bl1), jnp.asarray(wl2, bf16), jnp.asarray(bl2),
        jnp.asarray(wl3, bf16), jnp.asarray(bl3),
    )


# --------------------------------- wrapper -----------------------------------

def lenet_avg_pool_forward(x_nchw, prepped):
    B, C, H, W = x_nchw.shape
    x2d = x_nchw.transpose(0, 2, 3, 1).reshape(B, H, W * C)   # rows=h, cols=w*C+c

    def const_spec(a):
        nd = a.ndim
        return pl.BlockSpec(a.shape, lambda b, _nd=nd: (0,) * _nd)

    out = pl.pallas_call(
        _lenet_kernel,
        out_shape=jax.ShapeDtypeStruct((B, 1, NPAD), jnp.float32),
        grid=(B,),
        in_specs=[pl.BlockSpec((1, H, W * C), lambda b: (b, 0, 0))]
                + [const_spec(a) for a in prepped],
        out_specs=pl.BlockSpec((1, 1, NPAD), lambda b: (b, 0, 0)),
        compiler_params=pltpu.CompilerParams(
            dimension_semantics=("parallel",)),
    )(x2d, *prepped)
    return out[:, 0, :NUM_CLASSES]


# ------------------------------- reference -----------------------------------

def reference_forward(x, params):
    """Plain-JAX f32 replica of the PyTorch module (correctness check only)."""
    def conv_relu(x, w, b):
        y = jax.lax.conv_general_dilated(
            x, w, window_strides=(1, 1), padding="VALID",
            dimension_numbers=("NCHW", "OIHW", "NCHW"))
        return jnp.maximum(y + b[None, :, None, None], 0.0)

    def pool(x):
        b, c, h, w = x.shape
        return x.reshape(b, c, h // 2, 2, w // 2, 2).mean(axis=(3, 5))

    x = pool(conv_relu(x, params["conv1_w"], params["conv1_b"]))
    x = pool(conv_relu(x, params["conv2_w"], params["conv2_b"]))
    x = x.reshape(x.shape[0], -1)
    x = jnp.maximum(x @ params["l1_w"].T + params["l1_b"], 0.0)
    x = jnp.maximum(x @ params["l2_w"].T + params["l2_b"], 0.0)
    logits = x @ params["l3_w"].T + params["l3_b"]
    return jax.nn.softmax(logits, axis=1)


# ---------------------------------- main --------------------------------------

def init_params(key):
    ks = jax.random.split(key, 10)
    s = 0.1
    return {
        "conv1_w": s * jax.random.normal(ks[0], (6, 3, 5, 5), jnp.float32),
        "conv1_b": s * jax.random.normal(ks[1], (6,), jnp.float32),
        "conv2_w": s * jax.random.normal(ks[2], (16, 6, 5, 5), jnp.float32),
        "conv2_b": s * jax.random.normal(ks[3], (16,), jnp.float32),
        "l1_w": s * jax.random.normal(ks[4], (120, 400), jnp.float32),
        "l1_b": s * jax.random.normal(ks[5], (120,), jnp.float32),
        "l2_w": s * jax.random.normal(ks[6], (84, 120), jnp.float32),
        "l2_b": s * jax.random.normal(ks[7], (84,), jnp.float32),
        "l3_w": s * jax.random.normal(ks[8], (10, 84), jnp.float32),
        "l3_b": s * jax.random.normal(ks[9], (10,), jnp.float32),
    }


if __name__ == "__main__":
    key = jax.random.PRNGKey(0)
    kx, kp = jax.random.split(key)
    # LeNet geometry requires 3x32x32 inputs (conv/pool stack yields 16*5*5=400).
    x = jax.random.normal(kx, (2, 3, 32, 32), jnp.float32)
    params = init_params(kp)
    prepped = prepare_params(params)

    fwd = jax.jit(lenet_avg_pool_forward)
    out = jax.block_until_ready(fwd(x, prepped))

    assert out.shape == (2, NUM_CLASSES), out.shape
    row_sums = jnp.sum(out, axis=1)
    assert bool(jnp.all(jnp.abs(row_sums - 1.0) < 1e-2)), row_sums

    ref = reference_forward(x, params)
    err = float(jnp.max(jnp.abs(out - ref)))
    assert err < 3e-2, f"max abs err vs f32 reference: {err}"
    print("KERNEL_OK")
</pallas_src>

<mosaic_0001>
module attributes {stable_mosaic.version = 11 : i64} {
  func.func @_lenet_kernel(%arg0: i32, %arg1: memref<1x32x96xf32, #tpu.memory_space<vmem>>, %arg2: memref<5x96x168xbf16, #tpu.memory_space<vmem>>, %arg3: memref<1x168xf32, #tpu.memory_space<vmem>>, %arg4: memref<14x28xbf16, #tpu.memory_space<vmem>>, %arg5: memref<168x84xbf16, #tpu.memory_space<vmem>>, %arg6: memref<5x84x160xbf16, #tpu.memory_space<vmem>>, %arg7: memref<1x160xf32, #tpu.memory_space<vmem>>, %arg8: memref<5x10xbf16, #tpu.memory_space<vmem>>, %arg9: memref<160x80xbf16, #tpu.memory_space<vmem>>, %arg10: memref<5x80x120xbf16, #tpu.memory_space<vmem>>, %arg11: memref<1x120xf32, #tpu.memory_space<vmem>>, %arg12: memref<120x84xbf16, #tpu.memory_space<vmem>>, %arg13: memref<1x84xf32, #tpu.memory_space<vmem>>, %arg14: memref<84x128xbf16, #tpu.memory_space<vmem>>, %arg15: memref<1x128xf32, #tpu.memory_space<vmem>>, %arg16: memref<1x1x128xf32, #tpu.memory_space<vmem>>) attributes {dimension_semantics = [#tpu.dimension_semantics<parallel>], iteration_bounds = array<i64: 2>, scalar_prefetch = 0 : i64, scratch_operands = 0 : i64, tpu.core_type = #tpu.core_type<tc>, window_params = [{transform_indices = @transform_0, window_bounds = array<i64: 1, 32, 96>}, {pipeline_mode = #tpu.pipeline_mode<synchronous>, transform_indices = @transform_1, window_bounds = array<i64: 5, 96, 168>}, {pipeline_mode = #tpu.pipeline_mode<synchronous>, transform_indices = @transform_2, window_bounds = array<i64: 1, 168>}, {pipeline_mode = #tpu.pipeline_mode<synchronous>, transform_indices = @transform_3, window_bounds = array<i64: 14, 28>}, {pipeline_mode = #tpu.pipeline_mode<synchronous>, transform_indices = @transform_4, window_bounds = array<i64: 168, 84>}, {pipeline_mode = #tpu.pipeline_mode<synchronous>, transform_indices = @transform_5, window_bounds = array<i64: 5, 84, 160>}, {pipeline_mode = #tpu.pipeline_mode<synchronous>, transform_indices = @transform_6, window_bounds = array<i64: 1, 160>}, {pipeline_mode = #tpu.pipeline_mode<synchronous>, transform_indices = @transform_7, window_bounds = array<i64: 5, 10>}, {pipeline_mode = #tpu.pipeline_mode<synchronous>, transform_indices = @transform_8, window_bounds = array<i64: 160, 80>}, {pipeline_mode = #tpu.pipeline_mode<synchronous>, transform_indices = @transform_9, window_bounds = array<i64: 5, 80, 120>}, {pipeline_mode = #tpu.pipeline_mode<synchronous>, transform_indices = @transform_10, window_bounds = array<i64: 1, 120>}, {pipeline_mode = #tpu.pipeline_mode<synchronous>, transform_indices = @transform_11, window_bounds = array<i64: 120, 84>}, {pipeline_mode = #tpu.pipeline_mode<synchronous>, transform_indices = @transform_12, window_bounds = array<i64: 1, 84>}, {pipeline_mode = #tpu.pipeline_mode<synchronous>, transform_indices = @transform_13, window_bounds = array<i64: 84, 128>}, {pipeline_mode = #tpu.pipeline_mode<synchronous>, transform_indices = @transform_14, window_bounds = array<i64: 1, 128>}, {transform_indices = @transform_15, window_bounds = array<i64: 1, 1, 128>}]} {
    %c0 = arith.constant 0 : index
    %c0_0 = arith.constant 0 : index
    %c0_1 = arith.constant 0 : index
    %0 = vector.load %arg1[%c0, %c0_0, %c0_1] : memref<1x32x96xf32, #tpu.memory_space<vmem>>, vector<1x32x96xf32>
    %1 = vector.shape_cast %0 : vector<1x32x96xf32> to vector<32x96xf32>
    %2 = vector.extract_strided_slice %1 {offsets = [0, 0], sizes = [28, 96], strides = [1, 1]} : vector<32x96xf32> to vector<28x96xf32>
    %3 = arith.truncf %2 : vector<28x96xf32> to vector<28x96xbf16>
    %c0_2 = arith.constant 0 : index
    %c0_3 = arith.constant 0 : index
    %c0_4 = arith.constant 0 : index
    %4 = vector.load %arg2[%c0_2, %c0_3, %c0_4] : memref<5x96x168xbf16, #tpu.memory_space<vmem>>, vector<1x96x168xbf16>
    %5 = vector.shape_cast %4 : vector<1x96x168xbf16> to vector<96x168xbf16>
    %cst = arith.constant dense<0.000000e+00> : vector<28x168xf32>
    %6 = tpu.matmul %3, %5, %cst {dimension_numbers = #tpu.dot_dimension_numbers<[1], [0], [0], [1], [0, 0, 1, 1], [], []>} : vector<28x96xbf16>, vector<96x168xbf16>, vector<28x168xf32> -> vector<28x168xf32>
    %7 = vector.extract_strided_slice %1 {offsets = [1, 0], sizes = [28, 96], strides = [1, 1]} : vector<32x96xf32> to vector<28x96xf32>
    %8 = arith.truncf %7 : vector<28x96xf32> to vector<28x96xbf16>
    %c1 = arith.constant 1 : index
    %c0_5 = arith.constant 0 : index
    %c0_6 = arith.constant 0 : index
    %9 = vector.load %arg2[%c1, %c0_5, %c0_6] : memref<5x96x168xbf16, #tpu.memory_space<vmem>>, vector<1x96x168xbf16>
    %10 = vector.shape_cast %9 : vector<1x96x168xbf16> to vector<96x168xbf16>
    %cst_7 = arith.constant dense<0.000000e+00> : vector<28x168xf32>
    %11 = tpu.matmul %8, %10, %cst_7 {dimension_numbers = #tpu.dot_dimension_numbers<[1], [0], [0], [1], [0, 0, 1, 1], [], []>} : vector<28x96xbf16>, vector<96x168xbf16>, vector<28x168xf32> -> vector<28x168xf32>
    %12 = arith.addf %6, %11 : vector<28x168xf32>
    %13 = vector.extract_strided_slice %1 {offsets = [2, 0], sizes = [28, 96], strides = [1, 1]} : vector<32x96xf32> to vector<28x96xf32>
    %14 = arith.truncf %13 : vector<28x96xf32> to vector<28x96xbf16>
    %c2 = arith.constant 2 : index
    %c0_8 = arith.constant 0 : index
    %c0_9 = arith.constant 0 : index
    %15 = vector.load %arg2[%c2, %c0_8, %c0_9] : memref<5x96x168xbf16, #tpu.memory_space<vmem>>, vector<1x96x168xbf16>
    %16 = vector.shape_cast %15 : vector<1x96x168xbf16> to vector<96x168xbf16>
    %cst_10 = arith.constant dense<0.000000e+00> : vector<28x168xf32>
    %17 = tpu.matmul %14, %16, %cst_10 {dimension_numbers = #tpu.dot_dimension_numbers<[1], [0], [0], [1], [0, 0, 1, 1], [], []>} : vector<28x96xbf16>, vector<96x168xbf16>, vector<28x168xf32> -> vector<28x168xf32>
    %18 = arith.addf %12, %17 : vector<28x168xf32>
    %19 = vector.extract_strided_slice %1 {offsets = [3, 0], sizes = [28, 96], strides = [1, 1]} : vector<32x96xf32> to vector<28x96xf32>
    %20 = arith.truncf %19 : vector<28x96xf32> to vector<28x96xbf16>
    %c3 = arith.constant 3 : index
    %c0_11 = arith.constant 0 : index
    %c0_12 = arith.constant 0 : index
    %21 = vector.load %arg2[%c3, %c0_11, %c0_12] : memref<5x96x168xbf16, #tpu.memory_space<vmem>>, vector<1x96x168xbf16>
    %22 = vector.shape_cast %21 : vector<1x96x168xbf16> to vector<96x168xbf16>
    %cst_13 = arith.constant dense<0.000000e+00> : vector<28x168xf32>
    %23 = tpu.matmul %20, %22, %cst_13 {dimension_numbers = #tpu.dot_dimension_numbers<[1], [0], [0], [1], [0, 0, 1, 1], [], []>} : vector<28x96xbf16>, vector<96x168xbf16>, vector<28x168xf32> -> vector<28x168xf32>
    %24 = arith.addf %18, %23 : vector<28x168xf32>
    %25 = vector.extract_strided_slice %1 {offsets = [4, 0], sizes = [28, 96], strides = [1, 1]} : vector<32x96xf32> to vector<28x96xf32>
    %26 = arith.truncf %25 : vector<28x96xf32> to vector<28x96xbf16>
    %c4 = arith.constant 4 : index
    %c0_14 = arith.constant 0 : index
    %c0_15 = arith.constant 0 : index
    %27 = vector.load %arg2[%c4, %c0_14, %c0_15] : memref<5x96x168xbf16, #tpu.memory_space<vmem>>, vector<1x96x168xbf16>
    %28 = vector.shape_cast %27 : vector<1x96x168xbf16> to vector<96x168xbf16>
    %cst_16 = arith.constant dense<0.000000e+00> : vector<28x168xf32>
    %29 = tpu.matmul %26, %28, %cst_16 {dimension_numbers = #tpu.dot_dimension_numbers<[1], [0], [0], [1], [0, 0, 1, 1], [], []>} : vector<28x96xbf16>, vector<96x168xbf16>, vector<28x168xf32> -> vector<28x168xf32>
    %30 = arith.addf %24, %29 : vector<28x168xf32>
    %c0_17 = arith.constant 0 : index
    %c0_18 = arith.constant 0 : index
    %31 = vector.load %arg3[%c0_17, %c0_18] : memref<1x168xf32, #tpu.memory_space<vmem>>, vector<1x168xf32>
    %32 = vector.broadcast %31 : vector<1x168xf32> to vector<28x168xf32>
    %33 = arith.addf %30, %32 : vector<28x168xf32>
    %cst_19 = arith.constant 0.000000e+00 : f32
    %34 = vector.broadcast %cst_19 : f32 to vector<28x168xf32>
    %35 = arith.maximumf %33, %34 : vector<28x168xf32>
    %c0_20 = arith.constant 0 : index
    %c0_21 = arith.constant 0 : index
    %36 = vector.load %arg4[%c0_20, %c0_21] : memref<14x28xbf16, #tpu.memory_space<vmem>>, vector<14x28xbf16>
    %37 = arith.truncf %35 : vector<28x168xf32> to vector<28x168xbf16>
    %cst_22 = arith.constant dense<0.000000e+00> : vector<14x168xf32>
    %38 = tpu.matmul %36, %37, %cst_22 {dimension_numbers = #tpu.dot_dimension_numbers<[1], [0], [0], [1], [0, 0, 1, 1], [], []>} : vector<14x28xbf16>, vector<28x168xbf16>, vector<14x168xf32> -> vector<14x168xf32>
    %39 = arith.truncf %38 : vector<14x168xf32> to vector<14x168xbf16>
    %c0_23 = arith.constant 0 : index
    %c0_24 = arith.constant 0 : index
    %40 = vector.load %arg5[%c0_23, %c0_24] : memref<168x84xbf16, #tpu.memory_space<vmem>>, vector<168x84xbf16>
    %cst_25 = arith.constant dense<0.000000e+00> : vector<14x84xf32>
    %41 = tpu.matmul %39, %40, %cst_25 {dimension_numbers = #tpu.dot_dimension_numbers<[1], [0], [0], [1], [0, 0, 1, 1], [], []>} : vector<14x168xbf16>, vector<168x84xbf16>, vector<14x84xf32> -> vector<14x84xf32>
    %42 = vector.extract_strided_slice %41 {offsets = [0, 0], sizes = [10, 84], strides = [1, 1]} : vector<14x84xf32> to vector<10x84xf32>
    %43 = arith.truncf %42 : vector<10x84xf32> to vector<10x84xbf16>
    %c0_26 = arith.constant 0 : index
    %c0_27 = arith.constant 0 : index
    %c0_28 = arith.constant 0 : index
    %44 = vector.load %arg6[%c0_26, %c0_27, %c0_28] : memref<5x84x160xbf16, #tpu.memory_space<vmem>>, vector<1x84x160xbf16>
    %45 = vector.shape_cast %44 : vector<1x84x160xbf16> to vector<84x160xbf16>
    %cst_29 = arith.constant dense<0.000000e+00> : vector<10x160xf32>
    %46 = tpu.matmul %43, %45, %cst_29 {dimension_numbers = #tpu.dot_dimension_numbers<[1], [0], [0], [1], [0, 0, 1, 1], [], []>} : vector<10x84xbf16>, vector<84x160xbf16>, vector<10x160xf32> -> vector<10x160xf32>
    %47 = vector.extract_strided_slice %41 {offsets = [1, 0], sizes = [10, 84], strides = [1, 1]} : vector<14x84xf32> to vector<10x84xf32>
    %48 = arith.truncf %47 : vector<10x84xf32> to vector<10x84xbf16>
    %c1_30 = arith.constant 1 : index
    %c0_31 = arith.constant 0 : index
    %c0_32 = arith.constant 0 : index
    %49 = vector.load %arg6[%c1_30, %c0_31, %c0_32] : memref<5x84x160xbf16, #tpu.memory_space<vmem>>, vector<1x84x160xbf16>
    %50 = vector.shape_cast %49 : vector<1x84x160xbf16> to vector<84x160xbf16>
    %cst_33 = arith.constant dense<0.000000e+00> : vector<10x160xf32>
    %51 = tpu.matmul %48, %50, %cst_33 {dimension_numbers = #tpu.dot_dimension_numbers<[1], [0], [0], [1], [0, 0, 1, 1], [], []>} : vector<10x84xbf16>, vector<84x160xbf16>, vector<10x160xf32> -> vector<10x160xf32>
    %52 = arith.addf %46, %51 : vector<10x160xf32>
    %53 = vector.extract_strided_slice %41 {offsets = [2, 0], sizes = [10, 84], strides = [1, 1]} : vector<14x84xf32> to vector<10x84xf32>
    %54 = arith.truncf %53 : vector<10x84xf32> to vector<10x84xbf16>
    %c2_34 = arith.constant 2 : index
    %c0_35 = arith.constant 0 : index
    %c0_36 = arith.constant 0 : index
    %55 = vector.load %arg6[%c2_34, %c0_35, %c0_36] : memref<5x84x160xbf16, #tpu.memory_space<vmem>>, vector<1x84x160xbf16>
    %56 = vector.shape_cast %55 : vector<1x84x160xbf16> to vector<84x160xbf16>
    %cst_37 = arith.constant dense<0.000000e+00> : vector<10x160xf32>
    %57 = tpu.matmul %54, %56, %cst_37 {dimension_numbers = #tpu.dot_dimension_numbers<[1], [0], [0], [1], [0, 0, 1, 1], [], []>} : vector<10x84xbf16>, vector<84x160xbf16>, vector<10x160xf32> -> vector<10x160xf32>
    %58 = arith.addf %52, %57 : vector<10x160xf32>
    %59 = vector.extract_strided_slice %41 {offsets = [3, 0], sizes = [10, 84], strides = [1, 1]} : vector<14x84xf32> to vector<10x84xf32>
    %60 = arith.truncf %59 : vector<10x84xf32> to vector<10x84xbf16>
    %c3_38 = arith.constant 3 : index
    %c0_39 = arith.constant 0 : index
    %c0_40 = arith.constant 0 : index
    %61 = vector.load %arg6[%c3_38, %c0_39, %c0_40] : memref<5x84x160xbf16, #tpu.memory_space<vmem>>, vector<1x84x160xbf16>
    %62 = vector.shape_cast %61 : vector<1x84x160xbf16> to vector<84x160xbf16>
    %cst_41 = arith.constant dense<0.000000e+00> : vector<10x160xf32>
    %63 = tpu.matmul %60, %62, %cst_41 {dimension_numbers = #tpu.dot_dimension_numbers<[1], [0], [0], [1], [0, 0, 1, 1], [], []>} : vector<10x84xbf16>, vector<84x160xbf16>, vector<10x160xf32> -> vector<10x160xf32>
    %64 = arith.addf %58, %63 : vector<10x160xf32>
    %65 = vector.extract_strided_slice %41 {offsets = [4, 0], sizes = [10, 84], strides = [1, 1]} : vector<14x84xf32> to vector<10x84xf32>
    %66 = arith.truncf %65 : vector<10x84xf32> to vector<10x84xbf16>
    %c4_42 = arith.constant 4 : index
    %c0_43 = arith.constant 0 : index
    %c0_44 = arith.constant 0 : index
    %67 = vector.load %arg6[%c4_42, %c0_43, %c0_44] : memref<5x84x160xbf16, #tpu.memory_space<vmem>>, vector<1x84x160xbf16>
    %68 = vector.shape_cast %67 : vector<1x84x160xbf16> to vector<84x160xbf16>
    %cst_45 = arith.constant dense<0.000000e+00> : vector<10x160xf32>
    %69 = tpu.matmul %66, %68, %cst_45 {dimension_numbers = #tpu.dot_dimension_numbers<[1], [0], [0], [1], [0, 0, 1, 1], [], []>} : vector<10x84xbf16>, vector<84x160xbf16>, vector<10x160xf32> -> vector<10x160xf32>
    %70 = arith.addf %64, %69 : vector<10x160xf32>
    %c0_46 = arith.constant 0 : index
    %c0_47 = arith.constant 0 : index
    %71 = vector.load %arg7[%c0_46, %c0_47] : memref<1x160xf32, #tpu.memory_space<vmem>>, vector<1x160xf32>
    %72 = vector.broadcast %71 : vector<1x160xf32> to vector<10x160xf32>
    %73 = arith.addf %70, %72 : vector<10x160xf32>
    %cst_48 = arith.constant 0.000000e+00 : f32
    %74 = vector.broadcast %cst_48 : f32 to vector<10x160xf32>
    %75 = arith.maximumf %73, %74 : vector<10x160xf32>
    %c0_49 = arith.constant 0 : index
    %c0_50 = arith.constant 0 : index
    %76 = vector.load %arg8[%c0_49, %c0_50] : memref<5x10xbf16, #tpu.memory_space<vmem>>, vector<5x10xbf16>
    %77 = arith.truncf %75 : vector<10x160xf32> to vector<10x160xbf16>
    %cst_51 = arith.constant dense<0.000000e+00> : vector<5x160xf32>
    %78 = tpu.matmul %76, %77, %cst_51 {dimension_numbers = #tpu.dot_dimension_numbers<[1], [0], [0], [1], [0, 0, 1, 1], [], []>} : vector<5x10xbf16>, vector<10x160xbf16>, vector<5x160xf32> -> vector<5x160xf32>
    %79 = arith.truncf %78 : vector<5x160xf32> to vector<5x160xbf16>
    %c0_52 = arith.constant 0 : index
    %c0_53 = arith.constant 0 : index
    %80 = vector.load %arg9[%c0_52, %c0_53] : memref<160x80xbf16, #tpu.memory_space<vmem>>, vector<160x80xbf16>
    %cst_54 = arith.constant dense<0.000000e+00> : vector<5x80xf32>
    %81 = tpu.matmul %79, %80, %cst_54 {dimension_numbers = #tpu.dot_dimension_numbers<[1], [0], [0], [1], [0, 0, 1, 1], [], []>} : vector<5x160xbf16>, vector<160x80xbf16>, vector<5x80xf32> -> vector<5x80xf32>
    %82 = vector.extract_strided_slice %81 {offsets = [0, 0], sizes = [1, 80], strides = [1, 1]} : vector<5x80xf32> to vector<1x80xf32>
    %83 = arith.truncf %82 : vector<1x80xf32> to vector<1x80xbf16>
    %c0_55 = arith.constant 0 : index
    %c0_56 = arith.constant 0 : index
    %c0_57 = arith.constant 0 : index
    %84 = vector.load %arg10[%c0_55, %c0_56, %c0_57] : memref<5x80x120xbf16, #tpu.memory_space<vmem>>, vector<1x80x120xbf16>
    %85 = vector.shape_cast %84 : vector<1x80x120xbf16> to vector<80x120xbf16>
    %cst_58 = arith.constant dense<0.000000e+00> : vector<1x120xf32>
    %86 = tpu.matmul %83, %85, %cst_58 {dimension_numbers = #tpu.dot_dimension_numbers<[1], [0], [0], [1], [0, 0, 1, 1], [], []>} : vector<1x80xbf16>, vector<80x120xbf16>, vector<1x120xf32> -> vector<1x120xf32>
    %87 = vector.extract_strided_slice %81 {offsets = [1, 0], sizes = [1, 80], strides = [1, 1]} : vector<5x80xf32> to vector<1x80xf32>
    %88 = arith.truncf %87 : vector<1x80xf32> to vector<1x80xbf16>
    %c1_59 = arith.constant 1 : index
    %c0_60 = arith.constant 0 : index
    %c0_61 = arith.constant 0 : index
    %89 = vector.load %arg10[%c1_59, %c0_60, %c0_61] : memref<5x80x120xbf16, #tpu.memory_space<vmem>>, vector<1x80x120xbf16>
    %90 = vector.shape_cast %89 : vector<1x80x120xbf16> to vector<80x120xbf16>
    %cst_62 = arith.constant dense<0.000000e+00> : vector<1x120xf32>
    %91 = tpu.matmul %88, %90, %cst_62 {dimension_numbers = #tpu.dot_dimension_numbers<[1], [0], [0], [1], [0, 0, 1, 1], [], []>} : vector<1x80xbf16>, vector<80x120xbf16>, vector<1x120xf32> -> vector<1x120xf32>
    %92 = arith.addf %86, %91 : vector<1x120xf32>
    %93 = vector.extract_strided_slice %81 {offsets = [2, 0], sizes = [1, 80], strides = [1, 1]} : vector<5x80xf32> to vector<1x80xf32>
    %94 = arith.truncf %93 : vector<1x80xf32> to vector<1x80xbf16>
    %c2_63 = arith.constant 2 : index
    %c0_64 = arith.constant 0 : index
    %c0_65 = arith.constant 0 : index
    %95 = vector.load %arg10[%c2_63, %c0_64, %c0_65] : memref<5x80x120xbf16, #tpu.memory_space<vmem>>, vector<1x80x120xbf16>
    %96 = vector.shape_cast %95 : vector<1x80x120xbf16> to vector<80x120xbf16>
    %cst_66 = arith.constant dense<0.000000e+00> : vector<1x120xf32>
    %97 = tpu.matmul %94, %96, %cst_66 {dimension_numbers = #tpu.dot_dimension_numbers<[1], [0], [0], [1], [0, 0, 1, 1], [], []>} : vector<1x80xbf16>, vector<80x120xbf16>, vector<1x120xf32> -> vector<1x120xf32>
    %98 = arith.addf %92, %97 : vector<1x120xf32>
    %99 = vector.extract_strided_slice %81 {offsets = [3, 0], sizes = [1, 80], strides = [1, 1]} : vector<5x80xf32> to vector<1x80xf32>
    %100 = arith.truncf %99 : vector<1x80xf32> to vector<1x80xbf16>
    %c3_67 = arith.constant 3 : index
    %c0_68 = arith.constant 0 : index
    %c0_69 = arith.constant 0 : index
    %101 = vector.load %arg10[%c3_67, %c0_68, %c0_69] : memref<5x80x120xbf16, #tpu.memory_space<vmem>>, vector<1x80x120xbf16>
    %102 = vector.shape_cast %101 : vector<1x80x120xbf16> to vector<80x120xbf16>
    %cst_70 = arith.constant dense<0.000000e+00> : vector<1x120xf32>
    %103 = tpu.matmul %100, %102, %cst_70 {dimension_numbers = #tpu.dot_dimension_numbers<[1], [0], [0], [1], [0, 0, 1, 1], [], []>} : vector<1x80xbf16>, vector<80x120xbf16>, vector<1x120xf32> -> vector<1x120xf32>
    %104 = arith.addf %98, %103 : vector<1x120xf32>
    %105 = vector.extract_strided_slice %81 {offsets = [4, 0], sizes = [1, 80], strides = [1, 1]} : vector<5x80xf32> to vector<1x80xf32>
    %106 = arith.truncf %105 : vector<1x80xf32> to vector<1x80xbf16>
    %c4_71 = arith.constant 4 : index
    %c0_72 = arith.constant 0 : index
    %c0_73 = arith.constant 0 : index
    %107 = vector.load %arg10[%c4_71, %c0_72, %c0_73] : memref<5x80x120xbf16, #tpu.memory_space<vmem>>, vector<1x80x120xbf16>
    %108 = vector.shape_cast %107 : vector<1x80x120xbf16> to vector<80x120xbf16>
    %cst_74 = arith.constant dense<0.000000e+00> : vector<1x120xf32>
    %109 = tpu.matmul %106, %108, %cst_74 {dimension_numbers = #tpu.dot_dimension_numbers<[1], [0], [0], [1], [0, 0, 1, 1], [], []>} : vector<1x80xbf16>, vector<80x120xbf16>, vector<1x120xf32> -> vector<1x120xf32>
    %110 = arith.addf %104, %109 : vector<1x120xf32>
    %c0_75 = arith.constant 0 : index
    %c0_76 = arith.constant 0 : index
    %111 = vector.load %arg11[%c0_75, %c0_76] : memref<1x120xf32, #tpu.memory_space<vmem>>, vector<1x120xf32>
    %112 = arith.addf %110, %111 : vector<1x120xf32>
    %cst_77 = arith.constant 0.000000e+00 : f32
    %113 = vector.broadcast %cst_77 : f32 to vector<1x120xf32>
    %114 = arith.maximumf %112, %113 : vector<1x120xf32>
    %115 = arith.truncf %114 : vector<1x120xf32> to vector<1x120xbf16>
    %c0_78 = arith.constant 0 : index
    %c0_79 = arith.constant 0 : index
    %116 = vector.load %arg12[%c0_78, %c0_79] : memref<120x84xbf16, #tpu.memory_space<vmem>>, vector<120x84xbf16>
    %cst_80 = arith.constant dense<0.000000e+00> : vector<1x84xf32>
    %117 = tpu.matmul %115, %116, %cst_80 {dimension_numbers = #tpu.dot_dimension_numbers<[1], [0], [0], [1], [0, 0, 1, 1], [], []>} : vector<1x120xbf16>, vector<120x84xbf16>, vector<1x84xf32> -> vector<1x84xf32>
    %c0_81 = arith.constant 0 : index
    %c0_82 = arith.constant 0 : index
    %118 = vector.load %arg13[%c0_81, %c0_82] : memref<1x84xf32, #tpu.memory_space<vmem>>, vector<1x84xf32>
    %119 = arith.addf %117, %118 : vector<1x84xf32>
    %cst_83 = arith.constant 0.000000e+00 : f32
    %120 = vector.broadcast %cst_83 : f32 to vector<1x84xf32>
    %121 = arith.maximumf %119, %120 : vector<1x84xf32>
    %122 = arith.truncf %121 : vector<1x84xf32> to vector<1x84xbf16>
    %c0_84 = arith.constant 0 : index
    %c0_85 = arith.constant 0 : index
    %123 = vector.load %arg14[%c0_84, %c0_85] : memref<84x128xbf16, #tpu.memory_space<vmem>>, vector<84x128xbf16>
    %cst_86 = arith.constant dense<0.000000e+00> : vector<1x128xf32>
    %124 = tpu.matmul %122, %123, %cst_86 {dimension_numbers = #tpu.dot_dimension_numbers<[1], [0], [0], [1], [0, 0, 1, 1], [], []>} : vector<1x84xbf16>, vector<84x128xbf16>, vector<1x128xf32> -> vector<1x128xf32>
    %c0_87 = arith.constant 0 : index
    %c0_88 = arith.constant 0 : index
    %125 = vector.load %arg15[%c0_87, %c0_88] : memref<1x128xf32, #tpu.memory_space<vmem>>, vector<1x128xf32>
    %126 = arith.addf %124, %125 : vector<1x128xf32>
    %cst_89 = arith.constant dense<0xFF800000> : vector<1xf32>
    %127 = vector.multi_reduction <maximumf>, %126, %cst_89 [1] : vector<1x128xf32> to vector<1xf32>
    %128 = vector.shape_cast %127 : vector<1xf32> to vector<1x1xf32>
    %129 = vector.broadcast %128 : vector<1x1xf32> to vector<1x128xf32>
    %130 = arith.subf %126, %129 : vector<1x128xf32>
    %131 = math.exp %130 : vector<1x128xf32>
    %cst_90 = arith.constant dense<0.000000e+00> : vector<1xf32>
    %132 = vector.multi_reduction <add>, %131, %cst_90 [1] : vector<1x128xf32> to vector<1xf32>
    %133 = vector.shape_cast %132 : vector<1xf32> to vector<1x1xf32>
    %134 = tpu.reciprocal %133 {approx = true} : vector<1x1xf32> -> vector<1x1xf32>
    %135 = vector.broadcast %134 : vector<1x1xf32> to vector<1x128xf32>
    %136 = arith.mulf %131, %135 : vector<1x128xf32>
    %c0_91 = arith.constant 0 : index
    %c0_92 = arith.constant 0 : index
    %c0_93 = arith.constant 0 : index
    %137 = vector.load %arg16[%c0_91, %c0_92, %c0_93] : memref<1x1x128xf32, #tpu.memory_space<vmem>>, vector<1x1x128xf32>
    %138 = vector.shape_cast %137 : vector<1x1x128xf32> to vector<1x128xf32>
    %139 = vector.shape_cast %136 : vector<1x128xf32> to vector<1x1x128xf32>
    tpu.vector_store %arg16[%c0_91, %c0_92, %c0_93], %139 {strides = array<i32>} : memref<1x1x128xf32, #tpu.memory_space<vmem>>, vector<1x1x128xf32>,
    return
  }
  func.func @transform_0(%arg0: i32) -> (i32, i32, i32) {
    %c0_i32 = arith.constant 0 : i32
    %c0_i32_0 = arith.constant 0 : i32
    %c0_i32_1 = arith.constant 0 : i32
    return %arg0, %c0_i32, %c0_i32_0 : i32, i32, i32
  }
  func.func @transform_1(%arg0: i32) -> (i32, i32, i32) {
    %c0_i32 = arith.constant 0 : i32
    %c0_i32_0 = arith.constant 0 : i32
    %c0_i32_1 = arith.constant 0 : i32
    %c0_i32_2 = arith.constant 0 : i32
    return %c0_i32, %c0_i32_0, %c0_i32_1 : i32, i32, i32
  }
  func.func @transform_2(%arg0: i32) -> (i32, i32) {
    %c0_i32 = arith.constant 0 : i32
    %c0_i32_0 = arith.constant 0 : i32
    %c0_i32_1 = arith.constant 0 : i32
    return %c0_i32, %c0_i32_0 : i32, i32
  }
  func.func @transform_3(%arg0: i32) -> (i32, i32) {
    %c0_i32 = arith.constant 0 : i32
    %c0_i32_0 = arith.constant 0 : i32
    %c0_i32_1 = arith.constant 0 : i32
    return %c0_i32, %c0_i32_0 : i32, i32
  }
  func.func @transform_4(%arg0: i32) -> (i32, i32) {
    %c0_i32 = arith.constant 0 : i32
    %c0_i32_0 = arith.constant 0 : i32
    %c0_i32_1 = arith.constant 0 : i32
    return %c0_i32, %c0_i32_0 : i32, i32
  }
  func.func @transform_5(%arg0: i32) -> (i32, i32, i32) {
    %c0_i32 = arith.constant 0 : i32
    %c0_i32_0 = arith.constant 0 : i32
    %c0_i32_1 = arith.constant 0 : i32
    %c0_i32_2 = arith.constant 0 : i32
    return %c0_i32, %c0_i32_0, %c0_i32_1 : i32, i32, i32
  }
  func.func @transform_6(%arg0: i32) -> (i32, i32) {
    %c0_i32 = arith.constant 0 : i32
    %c0_i32_0 = arith.constant 0 : i32
    %c0_i32_1 = arith.constant 0 : i32
    return %c0_i32, %c0_i32_0 : i32, i32
  }
  func.func @transform_7(%arg0: i32) -> (i32, i32) {
    %c0_i32 = arith.constant 0 : i32
    %c0_i32_0 = arith.constant 0 : i32
    %c0_i32_1 = arith.constant 0 : i32
    return %c0_i32, %c0_i32_0 : i32, i32
  }
  func.func @transform_8(%arg0: i32) -> (i32, i32) {
    %c0_i32 = arith.constant 0 : i32
    %c0_i32_0 = arith.constant 0 : i32
    %c0_i32_1 = arith.constant 0 : i32
    return %c0_i32, %c0_i32_0 : i32, i32
  }
  func.func @transform_9(%arg0: i32) -> (i32, i32, i32) {
    %c0_i32 = arith.constant 0 : i32
    %c0_i32_0 = arith.constant 0 : i32
    %c0_i32_1 = arith.constant 0 : i32
    %c0_i32_2 = arith.constant 0 : i32
    return %c0_i32, %c0_i32_0, %c0_i32_1 : i32, i32, i32
  }
  func.func @transform_10(%arg0: i32) -> (i32, i32) {
    %c0_i32 = arith.constant 0 : i32
    %c0_i32_0 = arith.constant 0 : i32
    %c0_i32_1 = arith.constant 0 : i32
    return %c0_i32, %c0_i32_0 : i32, i32
  }
  func.func @transform_11(%arg0: i32) -> (i32, i32) {
    %c0_i32 = arith.constant 0 : i32
    %c0_i32_0 = arith.constant 0 : i32
    %c0_i32_1 = arith.constant 0 : i32
    return %c0_i32, %c0_i32_0 : i32, i32
  }
  func.func @transform_12(%arg0: i32) -> (i32, i32) {
    %c0_i32 = arith.constant 0 : i32
    %c0_i32_0 = arith.constant 0 : i32
    %c0_i32_1 = arith.constant 0 : i32
    return %c0_i32, %c0_i32_0 : i32, i32
  }
  func.func @transform_13(%arg0: i32) -> (i32, i32) {
    %c0_i32 = arith.constant 0 : i32
    %c0_i32_0 = arith.constant 0 : i32
    %c0_i32_1 = arith.constant 0 : i32
    return %c0_i32, %c0_i32_0 : i32, i32
  }
  func.func @transform_14(%arg0: i32) -> (i32, i32) {
    %c0_i32 = arith.constant 0 : i32
    %c0_i32_0 = arith.constant 0 : i32
    %c0_i32_1 = arith.constant 0 : i32
    return %c0_i32, %c0_i32_0 : i32, i32
  }
  func.func @transform_15(%arg0: i32) -> (i32, i32, i32) {
    %c0_i32 = arith.constant 0 : i32
    %c0_i32_0 = arith.constant 0 : i32
    %c0_i32_1 = arith.constant 0 : i32
    return %arg0, %c0_i32, %c0_i32_0 : i32, i32, i32
  }
}

</mosaic_0001>

<llo_original>
// kernel: lenet_avg_pool_forward.1
$region0: #{lenet_avg_pool_forward.1}
  #allocation0 [shape = 'u32[]', space=smem, size = 0x4, offset = 0x4, fixed_abs, tag = 'smem constant byte address 0x4 - core index']
  #allocation1 [shape = 'u32[144,128]{1,0:T(1,128)}', space=vmem, size = 0x12000, scoped, tag = 'internal scratch']
  %s0 = inlined_call_operand.vmem [shape: f32[2,32,96], index: 0, kind: input, shape index: {}]
  %s1 = inlined_call_operand.vmem [shape: bf16[5,96,168], index: 1, kind: input, shape index: {}]
  %s2 = inlined_call_operand.vmem [shape: f32[1,168], index: 2, kind: input, shape index: {}]
  %s3 = inlined_call_operand.vmem [shape: bf16[14,28], index: 3, kind: input, shape index: {}]
  %s4 = inlined_call_operand.vmem [shape: bf16[168,84], index: 4, kind: input, shape index: {}]
  %s5 = inlined_call_operand.vmem [shape: bf16[5,84,160], index: 5, kind: input, shape index: {}]
  %s6 = inlined_call_operand.vmem [shape: f32[1,160], index: 6, kind: input, shape index: {}]
  %s7 = inlined_call_operand.vmem [shape: bf16[5,10], index: 7, kind: input, shape index: {}]
  %s8 = inlined_call_operand.vmem [shape: bf16[160,80], index: 8, kind: input, shape index: {}]
  %s9 = inlined_call_operand.vmem [shape: bf16[5,80,120], index: 9, kind: input, shape index: {}]
  %s10 = inlined_call_operand.vmem [shape: f32[1,120], index: 10, kind: input, shape index: {}]
  %s11 = inlined_call_operand.vmem [shape: bf16[120,84], index: 11, kind: input, shape index: {}]
  %s12 = inlined_call_operand.vmem [shape: f32[1,84], index: 12, kind: input, shape index: {}]
  %s13 = inlined_call_operand.vmem [shape: bf16[84,128], index: 13, kind: input, shape index: {}]
  %s14 = inlined_call_operand.vmem [shape: f32[1,128], index: 14, kind: input, shape index: {}]
  %s15 = inlined_call_operand.hbm [shape: f32[2,1,128], index: 15, kind: output, shape index: {}]
  %s16 = sld [smem:[#allocation0]]
  $region93: #{lenet_avg_pool_forward.1} parent=0
    _
  %s18 = ssub.s32 1, %s16
  %s19 = scalar_select 0, %s18, %s16
  $region1: #{lenet_avg_pool_forward.1} parent=0
    #allocation2 [shape = 'u8[1024]{0}', space=vmem, size = 0x400, scoped, tag = 'output window, operand 0']
    #allocation3 [shape = 's32[2]{0}', space=sflag, size = 0x8, scoped, tag = 'scoped memory for lenet_avg_pool_forward.1']
    %20 = vsyncpa [#allocation3], 0
    %s21 = scalar_lea.sflag [#allocation3], 1
    %22 = vsyncpa %s21, 0
    loop: start=0, step=1, limit=4
    $region2: #{lenet_avg_pool_forward.1} parent=1 // loop_pre_header
      _
    $region3: #{lenet_avg_pool_forward.1} parent=1 // loop_header
      %s24 = sphi 0, %s28
      %p25 = scmp.ge.s32.totalorder %s24, 4
      %s34 = sphi 0, %s36
      %s37 = sphi 0, %s34
      %s38 = sphi 0, %s37
      %s54 = sphi 0, %s38
      %s58 = sphi 0, %s58
      %s60 = sphi 0, %s58
      %s61 = sphi 0, %s60
      %s75 = sphi 0, %s61
      %s79 = sphi 0, %s79
      %s81 = sphi 0, %s79
      %s82 = sphi 0, %s81
      %s96 = sphi 0, %s82
      %s100 = sphi 0, %s100
      %s102 = sphi 0, %s100
      %s103 = sphi 0, %s102
      %s117 = sphi 0, %s103
      %s121 = sphi 0, %s121
      %s123 = sphi 0, %s121
      %s124 = sphi 0, %s123
      %s138 = sphi 0, %s124
      %s142 = sphi 0, %s142
      %s144 = sphi 0, %s142
      %s145 = sphi 0, %s144
      %s159 = sphi 0, %s145
      %s163 = sphi 0, %s163
      %s165 = sphi 0, %s163
      %s166 = sphi 0, %s165
      %s180 = sphi 0, %s166
      %s184 = sphi 0, %s184
      %s186 = sphi 0, %s184
      %s187 = sphi 0, %s186
      %s201 = sphi 0, %s187
      %s205 = sphi 0, %s205
      %s207 = sphi 0, %s205
      %s208 = sphi 0, %s207
      %s222 = sphi 0, %s208
      %s226 = sphi 0, %s226
      %s228 = sphi 0, %s226
      %s229 = sphi 0, %s228
      %s243 = sphi 0, %s229
      %s247 = sphi 0, %s247
      %s249 = sphi 0, %s247
      %s250 = sphi 0, %s249
      %s264 = sphi 0, %s250
      %s268 = sphi 0, %s268
      %s270 = sphi 0, %s268
      %s271 = sphi 0, %s270
      %s285 = sphi 0, %s271
      %s289 = sphi 0, %s289
      %s291 = sphi 0, %s289
      %s292 = sphi 0, %s291
      %s306 = sphi 0, %s292
      %s310 = sphi 0, %s310
      %s312 = sphi 0, %s310
      %s313 = sphi 0, %s312
      %s327 = sphi 0, %s313
      %s331 = sphi 0, %s331
      %s333 = sphi 0, %s331
      %s334 = sphi 0, %s333
      %s348 = sphi 0, %s334
      %s354 = sphi 0, %s356
      %s357 = sphi 0, %s354
      %s358 = sphi 0, %s357
      %s374 = sphi 0, %s358
    $region4: #{lenet_avg_pool_forward.1} parent=1 // loop_header_branch
      %27 = sbr.rel (%p25) target = $region8
    $region5: #{lenet_avg_pool_forward.1} parent=1 // loop_body
      %s29 = ssub.s32 %s24, 1
      %s30 = ssub.s32 %s24, 2
      %s31 = sadd.s32 %s24, 1
      %s32 = ssub.s32 %s24, %s31
      %p33 = scmp.eq.s32.totalorder %s32, 0
      %s35 = sadd.s32 %s34, 1
      %s36 = scalar_select %p33, %s34, %s35
      %p39 = pneg %p33
      %p40 = scmp.eq.s32.totalorder %s24, 1
      %p41 = por %p39, %p40
      %p42 = scmp.ne.s32.totalorder %s34, %s37
      %p43 = scmp.eq.s32.totalorder %s24, 0
      %p44 = por %p42, %p43
      %p45 = scmp.ne.s32.totalorder %s34, %s37
      %p46 = scmp.eq.s32.totalorder %s29, 1
      %p47 = por %p45, %p46
      %p48 = scmp.ne.s32.totalorder %s37, %s38
      %p49 = scmp.eq.s32.totalorder %s29, 0
      %p50 = por %p48, %p49
      %p51 = scmp.ne.s32.totalorder %s37, %s38
      %p52 = scmp.eq.s32.totalorder %s30, 1
      %p53 = por %p51, %p52
      %p55 = scmp.ne.s32.totalorder %s38, %s54
      %p56 = scmp.eq.s32.totalorder %s30, 0
      %p57 = por %p55, %p56
      %s59 = sadd.s32 %s58, 1
      %p62 = scmp.eq.s32.totalorder %s24, 1
      %p63 = scmp.ne.s32.totalorder %s58, %s60
      %p64 = scmp.eq.s32.totalorder %s24, 0
      %p65 = por %p63, %p64
      %p66 = scmp.ne.s32.totalorder %s58, %s60
      %p67 = scmp.eq.s32.totalorder %s29, 1
      %p68 = por %p66, %p67
      %p69 = scmp.ne.s32.totalorder %s60, %s61
      %p70 = scmp.eq.s32.totalorder %s29, 0
      %p71 = por %p69, %p70
      %p72 = scmp.ne.s32.totalorder %s60, %s61
      %p73 = scmp.eq.s32.totalorder %s30, 1
      %p74 = por %p72, %p73
      %p76 = scmp.ne.s32.totalorder %s61, %s75
      %p77 = scmp.eq.s32.totalorder %s30, 0
      %p78 = por %p76, %p77
      %s80 = sadd.s32 %s79, 1
      %p83 = scmp.eq.s32.totalorder %s24, 1
      %p84 = scmp.ne.s32.totalorder %s79, %s81
      %p85 = scmp.eq.s32.totalorder %s24, 0
      %p86 = por %p84, %p85
      %p87 = scmp.ne.s32.totalorder %s79, %s81
      %p88 = scmp.eq.s32.totalorder %s29, 1
      %p89 = por %p87, %p88
      %p90 = scmp.ne.s32.totalorder %s81, %s82
      %p91 = scmp.eq.s32.totalorder %s29, 0
      %p92 = por %p90, %p91
      %p93 = scmp.ne.s32.totalorder %s81, %s82
      %p94 = scmp.eq.s32.totalorder %s30, 1
      %p95 = por %p93, %p94
      %p97 = scmp.ne.s32.totalorder %s82, %s96
      %p98 = scmp.eq.s32.totalorder %s30, 0
      %p99 = por %p97, %p98
      %s101 = sadd.s32 %s100, 1
      %p104 = scmp.eq.s32.totalorder %s24, 1
      %p105 = scmp.ne.s32.totalorder %s100, %s102
      %p106 = scmp.eq.s32.totalorder %s24, 0
      %p107 = por %p105, %p106
      %p108 = scmp.ne.s32.totalorder %s100, %s102
      %p109 = scmp.eq.s32.totalorder %s29, 1
      %p110 = por %p108, %p109
      %p111 = scmp.ne.s32.totalorder %s102, %s103
      %p112 = scmp.eq.s32.totalorder %s29, 0
      %p113 = por %p111, %p112
      %p114 = scmp.ne.s32.totalorder %s102, %s103
      %p115 = scmp.eq.s32.totalorder %s30, 1
      %p116 = por %p114, %p115
      %p118 = scmp.ne.s32.totalorder %s103, %s117
      %p119 = scmp.eq.s32.totalorder %s30, 0
      %p120 = por %p118, %p119
      %s122 = sadd.s32 %s121, 1
      %p125 = scmp.eq.s32.totalorder %s24, 1
      %p126 = scmp.ne.s32.totalorder %s121, %s123
      %p127 = scmp.eq.s32.totalorder %s24, 0
      %p128 = por %p126, %p127
      %p129 = scmp.ne.s32.totalorder %s121, %s123
      %p130 = scmp.eq.s32.totalorder %s29, 1
      %p131 = por %p129, %p130
      %p132 = scmp.ne.s32.totalorder %s123, %s124
      %p133 = scmp.eq.s32.totalorder %s29, 0
      %p134 = por %p132, %p133
      %p135 = scmp.ne.s32.totalorder %s123, %s124
      %p136 = scmp.eq.s32.totalorder %s30, 1
      %p137 = por %p135, %p136
      %p139 = scmp.ne.s32.totalorder %s124, %s138
      %p140 = scmp.eq.s32.totalorder %s30, 0
      %p141 = por %p139, %p140
      %s143 = sadd.s32 %s142, 1
      %p146 = scmp.eq.s32.totalorder %s24, 1
      %p147 = scmp.ne.s32.totalorder %s142, %s144
      %p148 = scmp.eq.s32.totalorder %s24, 0
      %p149 = por %p147, %p148
      %p150 = scmp.ne.s32.totalorder %s142, %s144
      %p151 = scmp.eq.s32.totalorder %s29, 1
      %p152 = por %p150, %p151
      %p153 = scmp.ne.s32.totalorder %s144, %s145
      %p154 = scmp.eq.s32.totalorder %s29, 0
      %p155 = por %p153, %p154
      %p156 = scmp.ne.s32.totalorder %s144, %s145
      %p157 = scmp.eq.s32.totalorder %s30, 1
      %p158 = por %p156, %p157
      %p160 = scmp.ne.s32.totalorder %s145, %s159
      %p161 = scmp.eq.s32.totalorder %s30, 0
      %p162 = por %p160, %p161
      %s164 = sadd.s32 %s163, 1
      %p167 = scmp.eq.s32.totalorder %s24, 1
      %p168 = scmp.ne.s32.totalorder %s163, %s165
      %p169 = scmp.eq.s32.totalorder %s24, 0
      %p170 = por %p168, %p169
      %p171 = scmp.ne.s32.totalorder %s163, %s165
      %p172 = scmp.eq.s32.totalorder %s29, 1
      %p173 = por %p171, %p172
      %p174 = scmp.ne.s32.totalorder %s165, %s166
      %p175 = scmp.eq.s32.totalorder %s29, 0
      %p176 = por %p174, %p175
      %p177 = scmp.ne.s32.totalorder %s165, %s166
      %p178 = scmp.eq.s32.totalorder %s30, 1
      %p179 = por %p177, %p178
      %p181 = scmp.ne.s32.totalorder %s166, %s180
      %p182 = scmp.eq.s32.totalorder %s30, 0
      %p183 = por %p181, %p182
      %s185 = sadd.s32 %s184, 1
      %p188 = scmp.eq.s32.totalorder %s24, 1
      %p189 = scmp.ne.s32.totalorder %s184, %s186
      %p190 = scmp.eq.s32.totalorder %s24, 0
      %p191 = por %p189, %p190
      %p192 = scmp.ne.s32.totalorder %s184, %s186
      %p193 = scmp.eq.s32.totalorder %s29, 1
      %p194 = por %p192, %p193
      %p195 = scmp.ne.s32.totalorder %s186, %s187
      %p196 = scmp.eq.s32.totalorder %s29, 0
      %p197 = por %p195, %p196
      %p198 = scmp.ne.s32.totalorder %s186, %s187
      %p199 = scmp.eq.s32.totalorder %s30, 1
      %p200 = por %p198, %p199
      %p202 = scmp.ne.s32.totalorder %s187, %s201
      %p203 = scmp.eq.s32.totalorder %s30, 0
      %p204 = por %p202, %p203
      %s206 = sadd.s32 %s205, 1
      %p209 = scmp.eq.s32.totalorder %s24, 1
      %p210 = scmp.ne.s32.totalorder %s205, %s207
      %p211 = scmp.eq.s32.totalorder %s24, 0
      %p212 = por %p210, %p211
      %p213 = scmp.ne.s32.totalorder %s205, %s207
      %p214 = scmp.eq.s32.totalorder %s29, 1
      %p215 = por %p213, %p214
      %p216 = scmp.ne.s32.totalorder %s207, %s208
      %p217 = scmp.eq.s32.totalorder %s29, 0
      %p218 = por %p216, %p217
      %p219 = scmp.ne.s32.totalorder %s207, %s208
      %p220 = scmp.eq.s32.totalorder %s30, 1
      %p221 = por %p219, %p220
      %p223 = scmp.ne.s32.totalorder %s208, %s222
      %p224 = scmp.eq.s32.totalorder %s30, 0
      %p225 = por %p223, %p224
      %s227 = sadd.s32 %s226, 1
      %p230 = scmp.eq.s32.totalorder %s24, 1
      %p231 = scmp.ne.s32.totalorder %s226, %s228
      %p232 = scmp.eq.s32.totalorder %s24, 0
      %p233 = por %p231, %p232
      %p234 = scmp.ne.s32.totalorder %s226, %s228
      %p235 = scmp.eq.s32.totalorder %s29, 1
      %p236 = por %p234, %p235
      %p237 = scmp.ne.s32.totalorder %s228, %s229
      %p238 = scmp.eq.s32.totalorder %s29, 0
      %p239 = por %p237, %p238
      %p240 = scmp.ne.s32.totalorder %s228, %s229
      %p241 = scmp.eq.s32.totalorder %s30, 1
      %p242 = por %p240, %p241
      %p244 = scmp.ne.s32.totalorder %s229, %s243
      %p245 = scmp.eq.s32.totalorder %s30, 0
      %p246 = por %p244, %p245
      %s248 = sadd.s32 %s247, 1
      %p251 = scmp.eq.s32.totalorder %s24, 1
      %p252 = scmp.ne.s32.totalorder %s247, %s249
      %p253 = scmp.eq.s32.totalorder %s24, 0
      %p254 = por %p252, %p253
      %p255 = scmp.ne.s32.totalorder %s247, %s249
      %p256 = scmp.eq.s32.totalorder %s29, 1
      %p257 = por %p255, %p256
      %p258 = scmp.ne.s32.totalorder %s249, %s250
      %p259 = scmp.eq.s32.totalorder %s29, 0
      %p260 = por %p258, %p259
      %p261 = scmp.ne.s32.totalorder %s249, %s250
      %p262 = scmp.eq.s32.totalorder %s30, 1
      %p263 = por %p261, %p262
      %p265 = scmp.ne.s32.totalorder %s250, %s264
      %p266 = scmp.eq.s32.totalorder %s30, 0
      %p267 = por %p265, %p266
      %s269 = sadd.s32 %s268, 1
      %p272 = scmp.eq.s32.totalorder %s24, 1
      %p273 = scmp.ne.s32.totalorder %s268, %s270
      %p274 = scmp.eq.s32.totalorder %s24, 0
      %p275 = por %p273, %p274
      %p276 = scmp.ne.s32.totalorder %s268, %s270
      %p277 = scmp.eq.s32.totalorder %s29, 1
      %p278 = por %p276, %p277
      %p279 = scmp.ne.s32.totalorder %s270, %s271
      %p280 = scmp.eq.s32.totalorder %s29, 0
      %p281 = por %p279, %p280
      %p282 = scmp.ne.s32.totalorder %s270, %s271
      %p283 = scmp.eq.s32.totalorder %s30, 1
      %p284 = por %p282, %p283
      %p286 = scmp.ne.s32.totalorder %s271, %s285
      %p287 = scmp.eq.s32.totalorder %s30, 0
      %p288 = por %p286, %p287
      %s290 = sadd.s32 %s289, 1
      %p293 = scmp.eq.s32.totalorder %s24, 1
      %p294 = scmp.ne.s32.totalorder %s289, %s291
      %p295 = scmp.eq.s32.totalorder %s24, 0
      %p296 = por %p294, %p295
      %p297 = scmp.ne.s32.totalorder %s289, %s291
      %p298 = scmp.eq.s32.totalorder %s29, 1
      %p299 = por %p297, %p298
      %p300 = scmp.ne.s32.totalorder %s291, %s292
      %p301 = scmp.eq.s32.totalorder %s29, 0
      %p302 = por %p300, %p301
      %p303 = scmp.ne.s32.totalorder %s291, %s292
      %p304 = scmp.eq.s32.totalorder %s30, 1
      %p305 = por %p303, %p304
      %p307 = scmp.ne.s32.totalorder %s292, %s306
      %p308 = scmp.eq.s32.totalorder %s30, 0
      %p309 = por %p307, %p308
      %s311 = sadd.s32 %s310, 1
      %p314 = scmp.eq.s32.totalorder %s24, 1
      %p315 = scmp.ne.s32.totalorder %s310, %s312
      %p316 = scmp.eq.s32.totalorder %s24, 0
      %p317 = por %p315, %p316
      %p318 = scmp.ne.s32.totalorder %s310, %s312
      %p319 = scmp.eq.s32.totalorder %s29, 1
      %p320 = por %p318, %p319
      %p321 = scmp.ne.s32.totalorder %s312, %s313
      %p322 = scmp.eq.s32.totalorder %s29, 0
      %p323 = por %p321, %p322
      %p324 = scmp.ne.s32.totalorder %s312, %s313
      %p325 = scmp.eq.s32.totalorder %s30, 1
      %p326 = por %p324, %p325
      %p328 = scmp.ne.s32.totalorder %s313, %s327
      %p329 = scmp.eq.s32.totalorder %s30, 0
      %p330 = por %p328, %p329
      %s332 = sadd.s32 %s331, 1
      %p335 = scmp.eq.s32.totalorder %s24, 1
      %p336 = scmp.ne.s32.totalorder %s331, %s333
      %p337 = scmp.eq.s32.totalorder %s24, 0
      %p338 = por %p336, %p337
      %p339 = scmp.ne.s32.totalorder %s331, %s333
      %p340 = scmp.eq.s32.totalorder %s29, 1
      %p341 = por %p339, %p340
      %p342 = scmp.ne.s32.totalorder %s333, %s334
      %p343 = scmp.eq.s32.totalorder %s29, 0
      %p344 = por %p342, %p343
      %p345 = scmp.ne.s32.totalorder %s333, %s334
      %p346 = scmp.eq.s32.totalorder %s30, 1
      %p347 = por %p345, %p346
      %p349 = scmp.ne.s32.totalorder %s334, %s348
      %p350 = scmp.eq.s32.totalorder %s30, 0
      %p351 = por %p349, %p350
      %s352 = ssub.s32 %s24, %s31
      %p353 = scmp.eq.s32.totalorder %s352, 0
      %s355 = sadd.s32 %s354, 1
      %s356 = scalar_select %p353, %s354, %s355
      %p359 = pneg %p353
      %p360 = scmp.eq.s32.totalorder %s24, 1
      %p361 = por %p359, %p360
      %p362 = scmp.ne.s32.totalorder %s354, %s357
      %p363 = scmp.eq.s32.totalorder %s24, 0
      %p364 = por %p362, %p363
      %p365 = scmp.ne.s32.totalorder %s354, %s357
      %p366 = scmp.eq.s32.totalorder %s29, 1
      %p367 = por %p365, %p366
      %p368 = scmp.ne.s32.totalorder %s357, %s358
      %p369 = scmp.eq.s32.totalorder %s29, 0
      %p370 = por %p368, %p369
      %p371 = scmp.ne.s32.totalorder %s357, %s358
      %p372 = scmp.eq.s32.totalorder %s30, 1
      %p373 = por %p371, %p372
      %p375 = scmp.ne.s32.totalorder %s358, %s374
      %p376 = scmp.eq.s32.totalorder %s30, 0
      %p377 = por %p375, %p376
      %p378 = scmp.le.s32.totalorder 1, %s24
      %p379 = scmp.lt.s32.totalorder %s24, 3
      %p380 = pnand %p378, %p379
      %p381 = pneg %p380
      // Predicated region
      $region9: #{lenet_avg_pool_forward.1} parent=5 // pred_check
        _
      $region10: #{lenet_avg_pool_forward.1} parent=5 // pred_check_branch
        %383 = sbr.rel (%p380) target = $region12
      $region11: #{lenet_avg_pool_forward.1} parent=5 // pred_region
        %s384 = ssub.s32 %s24, 1
        // Predicated region
        $region13: #{lenet_avg_pool_forward.1} parent=11 // pred_check
          %p385 = pneg %p71
        $region14: #{lenet_avg_pool_forward.1} parent=11 // pred_check_branch
          %387 = sbr.rel (%p385) target = $region16
        $region15: #{lenet_avg_pool_forward.1} parent=11 // pred_region
          _
        $region16: #{lenet_avg_pool_forward.1} parent=11 // pred_fallthru
          _
        // Predicated region
        $region17: #{lenet_avg_pool_forward.1} parent=11 // pred_check
          %p388 = pneg %p92
        $region18: #{lenet_avg_pool_forward.1} parent=11 // pred_check_branch
          %390 = sbr.rel (%p388) target = $region20
        $region19: #{lenet_avg_pool_forward.1} parent=11 // pred_region
          _
        $region20: #{lenet_avg_pool_forward.1} parent=11 // pred_fallthru
          _
        // Predicated region
        $region21: #{lenet_avg_pool_forward.1} parent=11 // pred_check
          %p391 = pneg %p113
        $region22: #{lenet_avg_pool_forward.1} parent=11 // pred_check_branch
          %393 = sbr.rel (%p391) target = $region24
        $region23: #{lenet_avg_pool_forward.1} parent=11 // pred_region
          _
        $region24: #{lenet_avg_pool_forward.1} parent=11 // pred_fallthru
          _
        // Predicated region
        $region25: #{lenet_avg_pool_forward.1} parent=11 // pred_check
          %p394 = pneg %p134
        $region26: #{lenet_avg_pool_forward.1} parent=11 // pred_check_branch
          %396 = sbr.rel (%p394) target = $region28
        $region27: #{lenet_avg_pool_forward.1} parent=11 // pred_region
          _
        $region28: #{lenet_avg_pool_forward.1} parent=11 // pred_fallthru
          _
        // Predicated region
        $region29: #{lenet_avg_pool_forward.1} parent=11 // pred_check
          %p397 = pneg %p155
        $region30: #{lenet_avg_pool_forward.1} parent=11 // pred_check_branch
          %399 = sbr.rel (%p397) target = $region32
        $region31: #{lenet_avg_pool_forward.1} parent=11 // pred_region
          _
        $region32: #{lenet_avg_pool_forward.1} parent=11 // pred_fallthru
          _
        // Predicated region
        $region33: #{lenet_avg_pool_forward.1} parent=11 // pred_check
          %p400 = pneg %p176
        $region34: #{lenet_avg_pool_forward.1} parent=11 // pred_check_branch
          %402 = sbr.rel (%p400) target = $region36
        $region35: #{lenet_avg_pool_forward.1} parent=11 // pred_region
          _
        $region36: #{lenet_avg_pool_forward.1} parent=11 // pred_fallthru
          _
        // Predicated region
        $region37: #{lenet_avg_pool_forward.1} parent=11 // pred_check
          %p403 = pneg %p197
        $region38: #{lenet_avg_pool_forward.1} parent=11 // pred_check_branch
          %405 = sbr.rel (%p403) target = $region40
        $region39: #{lenet_avg_pool_forward.1} parent=11 // pred_region
          _
        $region40: #{lenet_avg_pool_forward.1} parent=11 // pred_fallthru
          _
        // Predicated region
        $region41: #{lenet_avg_pool_forward.1} parent=11 // pred_check
          %p406 = pneg %p218
        $region42: #{lenet_avg_pool_forward.1} parent=11 // pred_check_branch
          %408 = sbr.rel (%p406) target = $region44
        $region43: #{lenet_avg_pool_forward.1} parent=11 // pred_region
          _
        $region44: #{lenet_avg_pool_forward.1} parent=11 // pred_fallthru
          _
        // Predicated region
        $region45: #{lenet_avg_pool_forward.1} parent=11 // pred_check
          %p409 = pneg %p239
        $region46: #{lenet_avg_pool_forward.1} parent=11 // pred_check_branch
          %411 = sbr.rel (%p409) target = $region48
        $region47: #{lenet_avg_pool_forward.1} parent=11 // pred_region
          _
        $region48: #{lenet_avg_pool_forward.1} parent=11 // pred_fallthru
          _
        // Predicated region
        $region49: #{lenet_avg_pool_forward.1} parent=11 // pred_check
          %p412 = pneg %p260
        $region50: #{lenet_avg_pool_forward.1} parent=11 // pred_check_branch
          %414 = sbr.rel (%p412) target = $region52
        $region51: #{lenet_avg_pool_forward.1} parent=11 // pred_region
          _
        $region52: #{lenet_avg_pool_forward.1} parent=11 // pred_fallthru
          _
        // Predicated region
        $region53: #{lenet_avg_pool_forward.1} parent=11 // pred_check
          %p415 = pneg %p281
        $region54: #{lenet_avg_pool_forward.1} parent=11 // pred_check_branch
          %417 = sbr.rel (%p415) target = $region56
        $region55: #{lenet_avg_pool_forward.1} parent=11 // pred_region
          _
        $region56: #{lenet_avg_pool_forward.1} parent=11 // pred_fallthru
          _
        // Predicated region
        $region57: #{lenet_avg_pool_forward.1} parent=11 // pred_check
          %p418 = pneg %p302
        $region58: #{lenet_avg_pool_forward.1} parent=11 // pred_check_branch
          %420 = sbr.rel (%p418) target = $region60
        $region59: #{lenet_avg_pool_forward.1} parent=11 // pred_region
          _
        $region60: #{lenet_avg_pool_forward.1} parent=11 // pred_fallthru
          _
        // Predicated region
        $region61: #{lenet_avg_pool_forward.1} parent=11 // pred_check
          %p421 = pneg %p323
        $region62: #{lenet_avg_pool_forward.1} parent=11 // pred_check_branch
          %423 = sbr.rel (%p421) target = $region64
        $region63: #{lenet_avg_pool_forward.1} parent=11 // pred_region
          _
        $region64: #{lenet_avg_pool_forward.1} parent=11 // pred_fallthru
          _
        // Predicated region
        $region65: #{lenet_avg_pool_forward.1} parent=11 // pred_check
          %p424 = pneg %p344
        $region66: #{lenet_avg_pool_forward.1} parent=11 // pred_check_branch
          %426 = sbr.rel (%p424) target = $region68
        $region67: #{lenet_avg_pool_forward.1} parent=11 // pred_region
          _
        $region68: #{lenet_avg_pool_forward.1} parent=11 // pred_fallthru
          _
      $region12: #{lenet_avg_pool_forward.1} parent=5 // pred_fallthru
        _
      %p427 = scmp.lt.s32.totalorder %s24, 2
      // Predicated region
      $region69: #{lenet_avg_pool_forward.1} parent=5 // pred_check
        %p428 = pneg %p427
      $region70: #{lenet_avg_pool_forward.1} parent=5 // pred_check_branch
        %430 = sbr.rel (%p428) target = $region72
      $region71: #{lenet_avg_pool_forward.1} parent=5 // pred_region
        // Predicated region
        $region73: #{lenet_avg_pool_forward.1} parent=71 // pred_check
          %p431 = pneg %p44
        $region74: #{lenet_avg_pool_forward.1} parent=71 // pred_check_branch
          %433 = sbr.rel (%p431) target = $region76
        $region75: #{lenet_avg_pool_forward.1} parent=71 // pred_region
          %p434 = scmp.lt.s32.totalorder %s24, 1
          %s435 = scalar_select %p434, %s24, 1
          %s436 = smul.addr %s435, 4
          %s437 = smul.addr %s436, 8
          %s438 = scalar_lea.vmem %s0, %s437
        $region76: #{lenet_avg_pool_forward.1} parent=71 // pred_fallthru
          _
      $region72: #{lenet_avg_pool_forward.1} parent=5 // pred_fallthru
        _
      %p439 = scmp.le.s32.totalorder 1, %s24
      %p440 = scmp.lt.s32.totalorder %s24, 3
      %p441 = pnand %p439, %p440
      %p442 = pneg %p441
      // Predicated region
      $region77: #{lenet_avg_pool_forward.1} parent=5 // pred_check
        _
      $region78: #{lenet_avg_pool_forward.1} parent=5 // pred_check_branch
        %444 = sbr.rel (%p441) target = $region80
      $region79: #{lenet_avg_pool_forward.1} parent=5 // pred_region
        %s445 = ssub.s32 %s24, 1
        %p446 = scmp.lt.s32.totalorder %s29, 1
        %s447 = scalar_select %p446, %s29, 1
        %s448 = smul.addr %s447, 4
        %s449 = smul.addr %s448, 8
        %s450 = scalar_lea.vmem %s0, %s449
        %p451 = pneg %p50
        %p452 = pneg %p47
        %p453 = pneg %p71
        %p454 = pneg %p68
        %p455 = pneg %p92
        %p456 = pneg %p89
        %p457 = pneg %p113
        %p458 = pneg %p110
        %p459 = pneg %p134
        %p460 = pneg %p131
        %p461 = pneg %p155
        %p462 = pneg %p152
        %p463 = pneg %p176
        %p464 = pneg %p173
        %p465 = pneg %p197
        %p466 = pneg %p194
        %p467 = pneg %p218
        %p468 = pneg %p215
        %p469 = pneg %p239
        %p470 = pneg %p236
        %p471 = pneg %p260
        %p472 = pneg %p257
        %p473 = pneg %p281
        %p474 = pneg %p278
        %p475 = pneg %p302
        %p476 = pneg %p299
        %p477 = pneg %p323
        %p478 = pneg %p320
        %p479 = pneg %p344
        %p480 = pneg %p341
        %p481 = pneg %p370
        %p482 = pneg %p367
        %s483 = sand.u32 %s357, 1
        %s484 = scalar_lea.sflag [#allocation3], %s483
        %s485 = sand.u32 %s357, 1
        %s486 = scalar_lea.vmem [#allocation2], %s485
        %p487 = scmp.lt.s32.totalorder %s29, 1
        %s488 = scalar_select %p487, %s29, 1
        %s489 = smul.addr %s488, 4
        %s490 = smul.addr %s489, 8
        %s491 = scalar_lea.vmem %s0, %s490
        %v493 = vld [vmem:[%s491] sm:$0xff]
        %v494 = vld [vmem:[%s491 + $0x8] sm:$0xff]
        %v495 = vld [vmem:[%s491 + $0x10] sm:$0xff]
        %v496 = vld [vmem:[%s491 + $0x18] sm:$0xff]
        %v497 = vpack.c.bf16 %v494, %v493
        %v498 = vpack.c.bf16 %v496, %v495
        %v499 = vld [vmem:[%s1] sm:$0xff]
        %v500 = vld [vmem:[%s1 + $0x8] sm:$0xff]
        %v501 = vld [vmem:[%s1 + $0x10] sm:$0xff]
        %v502 = vld [vmem:[%s1 + $0x18] sm:$0xff]
        %v503 = vld [vmem:[%s1 + $0x20] sm:$0xff]
        %v504 = vld [vmem:[%s1 + $0x28] sm:$0xff]
        %v505 = vld [vmem:[%s1 + $0x30] sm:$0xff]
        %v506 = vld [vmem:[%s1 + $0x38] sm:$0xff]
        %v507 = vld [vmem:[%s1 + $0x40] sm:$0xff]
        %v508 = vld [vmem:[%s1 + $0x48] sm:$0xff]
        %v509 = vld [vmem:[%s1 + $0x50] sm:$0xff]
        %v510 = vld [vmem:[%s1 + $0x58] sm:$0xff]
        %s511 = scalar_lea.vmem %s1, 96
        %v512 = vld [vmem:[%s511] sm:$0xff]
        %v513 = vld [vmem:[%s511 + $0x8] sm:$0xff]
        %v514 = vld [vmem:[%s511 + $0x10] sm:$0xff]
        %v515 = vld [vmem:[%s511 + $0x18] sm:$0xff]
        %v516 = vld [vmem:[%s511 + $0x20] sm:$0xff]
        %v517 = vld [vmem:[%s511 + $0x28] sm:$0xff]
        %v518 = vld [vmem:[%s511 + $0x30] sm:$0xff]
        %v519 = vld [vmem:[%s511 + $0x38] sm:$0xff]
        %v520 = vld [vmem:[%s511 + $0x40] sm:$0xff]
        %v521 = vld [vmem:[%s511 + $0x48] sm:$0xff]
        %v522 = vld [vmem:[%s511 + $0x50] sm:$0xff]
        %v523 = vld [vmem:[%s511 + $0x58] sm:$0xff]
        %vm524 = vsmask.f32 7424
        %v526 = vshrl.u32 %v497, 16
        %v528 = vshll.u32 %v497, 16
        %v530 = vrot.slane %v528, 1
        %v531 = vor.u32 %v526, %v530
        %v533 = vshll.u32 %v498, 16
        %v535 = vrot.slane %v533, 1
        %v536 = vsel %vm524, %v531, %v535
        %v537 = vshrl.u32 %v498, 16
        %v539 = vor.u32 %v537, %v535
        %v552 = vunpack.c.l.b16 %v512
        %v553 = vunpack.c.h.b16 %v512
        %v554 = vunpack.c.l.b16 %v513
        %v555 = vunpack.c.h.b16 %v513
        %v556 = vunpack.c.l.b16 %v514
        %v557 = vunpack.c.h.b16 %v514
        %v558 = vunpack.c.l.b16 %v515
        %v559 = vunpack.c.h.b16 %v515
        %v560 = vunpack.c.l.b16 %v516
        %v561 = vunpack.c.h.b16 %v516
        %v562 = vunpack.c.l.b16 %v517
        %v563 = vunpack.c.h.b16 %v517
        %v564 = vunpack.c.l.b16 %v518
        %v565 = vunpack.c.h.b16 %v518
        %v566 = vunpack.c.l.b16 %v519
        %v567 = vunpack.c.h.b16 %v519
        %v568 = vunpack.c.l.b16 %v520
        %v569 = vunpack.c.h.b16 %v520
        %v570 = vunpack.c.l.b16 %v521
        %v571 = vunpack.c.h.b16 %v521
        %v572 = vunpack.c.l.b16 %v522
        %v573 = vunpack.c.h.b16 %v522
        %v574 = vunpack.c.l.b16 %v523
        %v575 = vunpack.c.h.b16 %v523
        %v576 = vpack.c.b16 %v554, %v552
        %v577 = vpack.c.b16 %v555, %v553
        %v578 = vpack.c.b16 %v558, %v556
        %v579 = vpack.c.b16 %v559, %v557
        %v580 = vpack.c.b16 %v562, %v560
        %v581 = vpack.c.b16 %v563, %v561
        %v582 = vpack.c.b16 %v566, %v564
        %v583 = vpack.c.b16 %v567, %v565
        %v584 = vpack.c.b16 %v570, %v568
        %v585 = vpack.c.b16 %v571, %v569
        %v586 = vpack.c.b16 %v574, %v572
        %v587 = vpack.c.b16 %v575, %v573
        %vm600 = vcmask 785408
        %v602 = vsel %vm600, %v536, 0
        %v605 = vsel %vm600, %v539, 0
        %607 = vmatprep.subr.bf16.mxu0 0
        %608 = vmatpush1.bf16.msra.mxu0 0
        %609 = vmatprep.subr.bf16.mxu0 0
        %610 = vmatpush1.bf16.msra.mxu0 0
        %611 = vmatprep.subr.bf16.mxu0 %v587
        %612 = vmatpush1.bf16.msra.mxu0 %v586
        %613 = vmatprep.subr.bf16.mxu0 %v585
        %614 = vmatpush1.bf16.msra.mxu0 %v584
        %615 = vmatprep.subr.bf16.mxu0 %v583
        %616 = vmatpush1.bf16.msra.mxu0 %v582
        %617 = vmatprep.subr.bf16.mxu0 %v581
        %618 = vmatpush1.bf16.msra.mxu0 %v580
        %619 = vmatprep.subr.bf16.mxu0 %v579
        %620 = vmatpush1.bf16.msra.mxu0 %v578
        %621 = vmatprep.subr.bf16.mxu0 %v577
        %622 = vmatpush1.bf16.msra.mxu0 %v576
        %623 = vmatprep.subr.bf16.mxu0 0
        %624 = vmatpush2.bf16.msra.mxu0 0
        %625 = vmatprep.subr.bf16.mxu0 0
        %626 = vmatpush2.bf16.msra.mxu0 0
        %627 = vmatprep.subr.bf16.mxu0 0
        %628 = vmatpush2.bf16.msra.mxu0 0
        %629 = vmatprep.subr.bf16.mxu0 0
        %630 = vmatpush2.bf16.msra.mxu0 0
        %631 = vmatprep.subr.bf16.mxu0 0
        %632 = vmatpush2.bf16.msra.mxu0 0
        %633 = vmatprep.subr.bf16.mxu0 0
        %634 = vmatpush2.bf16.msra.mxu0 0
        %635 = vmatprep.subr.bf16.mxu0 0
        %636 = vmatpush2.bf16.msra.mxu0 0
        %637 = vmatprep.subr.bf16.mxu0 0
        %638 = vmatpush2.bf16.msra.mxu0 0
        %639 = vmatprep.mubr.bf16.mxu0 0
        %640 = vmatmul.mubr.bf16.gmra.mxu0 %v602
        %v641 = vpop.f32.mrf.mxu0
        %v642 = vadd.f32 0.0, %v641
        %v643 = vpop.f32.mrf.mxu0
        %v644 = vadd.f32 0.0, %v643
        %v645 = vpop.f32.mrf.mxu0
        %v646 = vadd.f32 0.0, %v645
        %v647 = vpop.f32.mrf.mxu0
        %v648 = vadd.f32 0.0, %v647
        %649 = vmatprep.mubr.bf16.mxu0 0
        %650 = vmatmul.mubr.bf16.gmra.mxu0 %v605
        %v651 = vpop.f32.mrf.mxu0
        %v652 = vadd.f32 0.0, %v651
        %v653 = vpop.f32.mrf.mxu0
        %v654 = vadd.f32 0.0, %v653
        %v655 = vpop.f32.mrf.mxu0
        %v656 = vadd.f32 0.0, %v655
        %v657 = vpop.f32.mrf.mxu0
        %v658 = vadd.f32 0.0, %v657
        %659 = vdwg.mxu0
        %v672 = vunpack.c.l.b16 %v499
        %v673 = vunpack.c.h.b16 %v499
        %v674 = vunpack.c.l.b16 %v500
        %v675 = vunpack.c.h.b16 %v500
        %v676 = vunpack.c.l.b16 %v501
        %v677 = vunpack.c.h.b16 %v501
        %v678 = vunpack.c.l.b16 %v502
        %v679 = vunpack.c.h.b16 %v502
        %v680 = vunpack.c.l.b16 %v503
        %v681 = vunpack.c.h.b16 %v503
        %v682 = vunpack.c.l.b16 %v504
        %v683 = vunpack.c.h.b16 %v504
        %v684 = vunpack.c.l.b16 %v505
        %v685 = vunpack.c.h.b16 %v505
        %v686 = vunpack.c.l.b16 %v506
        %v687 = vunpack.c.h.b16 %v506
        %v688 = vunpack.c.l.b16 %v507
        %v689 = vunpack.c.h.b16 %v507
        %v690 = vunpack.c.l.b16 %v508
        %v691 = vunpack.c.h.b16 %v508
        %v692 = vunpack.c.l.b16 %v509
        %v693 = vunpack.c.h.b16 %v509
        %v694 = vunpack.c.l.b16 %v510
        %v695 = vunpack.c.h.b16 %v510
        %v696 = vpack.c.b16 %v674, %v672
        %v697 = vpack.c.b16 %v675, %v673
        %v698 = vpack.c.b16 %v678, %v676
        %v699 = vpack.c.b16 %v679, %v677
        %v700 = vpack.c.b16 %v682, %v680
        %v701 = vpack.c.b16 %v683, %v681
        %v702 = vpack.c.b16 %v686, %v684
        %v703 = vpack.c.b16 %v687, %v685
        %v704 = vpack.c.b16 %v690, %v688
        %v705 = vpack.c.b16 %v691, %v689
        %v706 = vpack.c.b16 %v694, %v692
        %v707 = vpack.c.b16 %v695, %v693
        %v720 = vsel %vm600, %v497, 0
        %v722 = vsel %vm600, %v498, 0
        %724 = vmatprep.subr.bf16.mxu0 0
        %725 = vmatpush1.bf16.msra.mxu0 0
        %726 = vmatprep.subr.bf16.mxu0 0
        %727 = vmatpush1.bf16.msra.mxu0 0
        %728 = vmatprep.subr.bf16.mxu0 %v707
        %729 = vmatpush1.bf16.msra.mxu0 %v706
        %730 = vmatprep.subr.bf16.mxu0 %v705
        %731 = vmatpush1.bf16.msra.mxu0 %v704
        %732 = vmatprep.subr.bf16.mxu0 %v703
        %733 = vmatpush1.bf16.msra.mxu0 %v702
        %734 = vmatprep.subr.bf16.mxu0 %v701
        %735 = vmatpush1.bf16.msra.mxu0 %v700
        %736 = vmatprep.subr.bf16.mxu0 %v699
        %737 = vmatpush1.bf16.msra.mxu0 %v698
        %738 = vmatprep.subr.bf16.mxu0 %v697
        %739 = vmatpush1.bf16.msra.mxu0 %v696
        %740 = vmatprep.subr.bf16.mxu0 0
        %741 = vmatpush2.bf16.msra.mxu0 0
        %742 = vmatprep.subr.bf16.mxu0 0
        %743 = vmatpush2.bf16.msra.mxu0 0
        %744 = vmatprep.subr.bf16.mxu0 0
        %745 = vmatpush2.bf16.msra.mxu0 0
        %746 = vmatprep.subr.bf16.mxu0 0
        %747 = vmatpush2.bf16.msra.mxu0 0
        %748 = vmatprep.subr.bf16.mxu0 0
        %749 = vmatpush2.bf16.msra.mxu0 0
        %750 = vmatprep.subr.bf16.mxu0 0
        %751 = vmatpush2.bf16.msra.mxu0 0
        %752 = vmatprep.subr.bf16.mxu0 0
        %753 = vmatpush2.bf16.msra.mxu0 0
        %754 = vmatprep.subr.bf16.mxu0 0
        %755 = vmatpush2.bf16.msra.mxu0 0
        %756 = vmatprep.mubr.bf16.mxu0 0
        %757 = vmatmul.mubr.bf16.gmra.mxu0 %v720
        %v758 = vpop.f32.mrf.mxu0
        %v759 = vadd.f32 %v642, %v758
        %v760 = vpop.f32.mrf.mxu0
        %v761 = vadd.f32 %v644, %v760
        %v762 = vpop.f32.mrf.mxu0
        %v763 = vadd.f32 %v646, %v762
        %v764 = vpop.f32.mrf.mxu0
        %v765 = vadd.f32 %v648, %v764
        %766 = vmatprep.mubr.bf16.mxu0 0
        %767 = vmatmul.mubr.bf16.gmra.mxu0 %v722
        %v768 = vpop.f32.mrf.mxu0
        %v769 = vadd.f32 %v652, %v768
        %v770 = vpop.f32.mrf.mxu0
        %v771 = vadd.f32 %v654, %v770
        %v772 = vpop.f32.mrf.mxu0
        %v773 = vadd.f32 %v656, %v772
        %v774 = vpop.f32.mrf.mxu0
        %v775 = vadd.f32 %v658, %v774
        %776 = vdwg.mxu0
        %s777 = scalar_lea.vmem %s1, 192
        %v778 = vld [vmem:[%s777] sm:$0xff]
        %v779 = vld [vmem:[%s777 + $0x8] sm:$0xff]
        %v780 = vld [vmem:[%s777 + $0x10] sm:$0xff]
        %v781 = vld [vmem:[%s777 + $0x18] sm:$0xff]
        %v782 = vld [vmem:[%s777 + $0x20] sm:$0xff]
        %v783 = vld [vmem:[%s777 + $0x28] sm:$0xff]
        %v784 = vld [vmem:[%s777 + $0x30] sm:$0xff]
        %v785 = vld [vmem:[%s777 + $0x38] sm:$0xff]
        %v786 = vld [vmem:[%s777 + $0x40] sm:$0xff]
        %v787 = vld [vmem:[%s777 + $0x48] sm:$0xff]
        %v788 = vld [vmem:[%s777 + $0x50] sm:$0xff]
        %v789 = vld [vmem:[%s777 + $0x58] sm:$0xff]
        %vm792 = vcmask 1046528
        %v793 = vrot.slane %v497, 1
        %v794 = vrot.slane %v498, 1
        %v795 = vsel %vm792, %v793, %v794
        %v808 = vunpack.c.l.b16 %v778
        %v809 = vunpack.c.h.b16 %v778
        %v810 = vunpack.c.l.b16 %v779
        %v811 = vunpack.c.h.b16 %v779
        %v812 = vunpack.c.l.b16 %v780
        %v813 = vunpack.c.h.b16 %v780
        %v814 = vunpack.c.l.b16 %v781
        %v815 = vunpack.c.h.b16 %v781
        %v816 = vunpack.c.l.b16 %v782
        %v817 = vunpack.c.h.b16 %v782
        %v818 = vunpack.c.l.b16 %v783
        %v819 = vunpack.c.h.b16 %v783
        %v820 = vunpack.c.l.b16 %v784
        %v821 = vunpack.c.h.b16 %v784
        %v822 = vunpack.c.l.b16 %v785
        %v823 = vunpack.c.h.b16 %v785
        %v824 = vunpack.c.l.b16 %v786
        %v825 = vunpack.c.h.b16 %v786
        %v826 = vunpack.c.l.b16 %v787
        %v827 = vunpack.c.h.b16 %v787
        %v828 = vunpack.c.l.b16 %v788
        %v829 = vunpack.c.h.b16 %v788
        %v830 = vunpack.c.l.b16 %v789
        %v831 = vunpack.c.h.b16 %v789
        %v832 = vpack.c.b16 %v810, %v808
        %v833 = vpack.c.b16 %v811, %v809
        %v834 = vpack.c.b16 %v814, %v812
        %v835 = vpack.c.b16 %v815, %v813
        %v836 = vpack.c.b16 %v818, %v816
        %v837 = vpack.c.b16 %v819, %v817
        %v838 = vpack.c.b16 %v822, %v820
        %v839 = vpack.c.b16 %v823, %v821
        %v840 = vpack.c.b16 %v826, %v824
        %v841 = vpack.c.b16 %v827, %v825
        %v842 = vpack.c.b16 %v830, %v828
        %v843 = vpack.c.b16 %v831, %v829
        %v857 = vsel %vm600, %v795, 0
        %v860 = vsel %vm600, %v794, 0
        %862 = vmatprep.subr.bf16.mxu0 0
        %863 = vmatpush1.bf16.msra.mxu0 0
        %864 = vmatprep.subr.bf16.mxu0 0
        %865 = vmatpush1.bf16.msra.mxu0 0
        %866 = vmatprep.subr.bf16.mxu0 %v843
        %867 = vmatpush1.bf16.msra.mxu0 %v842
        %868 = vmatprep.subr.bf16.mxu0 %v841
        %869 = vmatpush1.bf16.msra.mxu0 %v840
        %870 = vmatprep.subr.bf16.mxu0 %v839
        %871 = vmatpush1.bf16.msra.mxu0 %v838
        %872 = vmatprep.subr.bf16.mxu0 %v837
        %873 = vmatpush1.bf16.msra.mxu0 %v836
        %874 = vmatprep.subr.bf16.mxu0 %v835
        %875 = vmatpush1.bf16.msra.mxu0 %v834
        %876 = vmatprep.subr.bf16.mxu0 %v833
        %877 = vmatpush1.bf16.msra.mxu0 %v832
        %878 = vmatprep.subr.bf16.mxu0 0
        %879 = vmatpush2.bf16.msra.mxu0 0
        %880 = vmatprep.subr.bf16.mxu0 0
        %881 = vmatpush2.bf16.msra.mxu0 0
        %882 = vmatprep.subr.bf16.mxu0 0
        %883 = vmatpush2.bf16.msra.mxu0 0
        %884 = vmatprep.subr.bf16.mxu0 0
        %885 = vmatpush2.bf16.msra.mxu0 0
        %886 = vmatprep.subr.bf16.mxu0 0
        %887 = vmatpush2.bf16.msra.mxu0 0
        %888 = vmatprep.subr.bf16.mxu0 0
        %889 = vmatpush2.bf16.msra.mxu0 0
        %890 = vmatprep.subr.bf16.mxu0 0
        %891 = vmatpush2.bf16.msra.mxu0 0
        %892 = vmatprep.subr.bf16.mxu0 0
        %893 = vmatpush2.bf16.msra.mxu0 0
        %894 = vmatprep.mubr.bf16.mxu0 0
        %895 = vmatmul.mubr.bf16.gmra.mxu0 %v857
        %v896 = vpop.f32.mrf.mxu0
        %v897 = vadd.f32 0.0, %v896
        %v898 = vpop.f32.mrf.mxu0
        %v899 = vadd.f32 0.0, %v898
        %v900 = vpop.f32.mrf.mxu0
        %v901 = vadd.f32 0.0, %v900
        %v902 = vpop.f32.mrf.mxu0
        %v903 = vadd.f32 0.0, %v902
        %904 = vmatprep.mubr.bf16.mxu0 0
        %905 = vmatmul.mubr.bf16.gmra.mxu0 %v860
        %v906 = vpop.f32.mrf.mxu0
        %v907 = vadd.f32 0.0, %v906
        %v908 = vpop.f32.mrf.mxu0
        %v909 = vadd.f32 0.0, %v908
        %v910 = vpop.f32.mrf.mxu0
        %v911 = vadd.f32 0.0, %v910
        %v912 = vpop.f32.mrf.mxu0
        %v913 = vadd.f32 0.0, %v912
        %914 = vdwg.mxu0
        %v915 = vadd.f32 %v759, %v897
        %v916 = vadd.f32 %v761, %v899
        %v917 = vadd.f32 %v763, %v901
        %v918 = vadd.f32 %v765, %v903
        %v919 = vadd.f32 %v769, %v907
        %v920 = vadd.f32 %v771, %v909
        %v921 = vadd.f32 %v773, %v911
        %v922 = vadd.f32 %v775, %v913
        %s923 = scalar_lea.vmem %s1, 288
        %v924 = vld [vmem:[%s923] sm:$0xff]
        %v925 = vld [vmem:[%s923 + $0x8] sm:$0xff]
        %v926 = vld [vmem:[%s923 + $0x10] sm:$0xff]
        %v927 = vld [vmem:[%s923 + $0x18] sm:$0xff]
        %v928 = vld [vmem:[%s923 + $0x20] sm:$0xff]
        %v929 = vld [vmem:[%s923 + $0x28] sm:$0xff]
        %v930 = vld [vmem:[%s923 + $0x30] sm:$0xff]
        %v931 = vld [vmem:[%s923 + $0x38] sm:$0xff]
        %v932 = vld [vmem:[%s923 + $0x40] sm:$0xff]
        %v933 = vld [vmem:[%s923 + $0x48] sm:$0xff]
        %v934 = vld [vmem:[%s923 + $0x50] sm:$0xff]
        %v935 = vld [vmem:[%s923 + $0x58] sm:$0xff]
        %vm936 = vsmask.f32 6400
        %v937 = vrot.slane %v526, 1
        %v938 = vrot.slane %v528, 2
        %v939 = vor.u32 %v937, %v938
        %v940 = vrot.slane %v537, 1
        %v941 = vrot.slane %v533, 2
        %v942 = vor.u32 %v940, %v941
        %v943 = vsel %vm936, %v939, %v942
        %v956 = vunpack.c.l.b16 %v924
        %v957 = vunpack.c.h.b16 %v924
        %v958 = vunpack.c.l.b16 %v925
        %v959 = vunpack.c.h.b16 %v925
        %v960 = vunpack.c.l.b16 %v926
        %v961 = vunpack.c.h.b16 %v926
        %v962 = vunpack.c.l.b16 %v927
        %v963 = vunpack.c.h.b16 %v927
        %v964 = vunpack.c.l.b16 %v928
        %v965 = vunpack.c.h.b16 %v928
        %v966 = vunpack.c.l.b16 %v929
        %v967 = vunpack.c.h.b16 %v929
        %v968 = vunpack.c.l.b16 %v930
        %v969 = vunpack.c.h.b16 %v930
        %v970 = vunpack.c.l.b16 %v931
        %v971 = vunpack.c.h.b16 %v931
        %v972 = vunpack.c.l.b16 %v932
        %v973 = vunpack.c.h.b16 %v932
        %v974 = vunpack.c.l.b16 %v933
        %v975 = vunpack.c.h.b16 %v933
        %v976 = vunpack.c.l.b16 %v934
        %v977 = vunpack.c.h.b16 %v934
        %v978 = vunpack.c.l.b16 %v935
        %v979 = vunpack.c.h.b16 %v935
        %v980 = vpack.c.b16 %v958, %v956
        %v981 = vpack.c.b16 %v959, %v957
        %v982 = vpack.c.b16 %v962, %v960
        %v983 = vpack.c.b16 %v963, %v961
        %v984 = vpack.c.b16 %v966, %v964
        %v985 = vpack.c.b16 %v967, %v965
        %v986 = vpack.c.b16 %v970, %v968
        %v987 = vpack.c.b16 %v971, %v969
        %v988 = vpack.c.b16 %v974, %v972
        %v989 = vpack.c.b16 %v975, %v973
        %v990 = vpack.c.b16 %v978, %v976
        %v991 = vpack.c.b16 %v979, %v977
        %v1005 = vsel %vm600, %v943, 0
        %v1008 = vsel %vm600, %v942, 0
        %1010 = vmatprep.subr.bf16.mxu0 0
        %1011 = vmatpush1.bf16.msra.mxu0 0
        %1012 = vmatprep.subr.bf16.mxu0 0
        %1013 = vmatpush1.bf16.msra.mxu0 0
        %1014 = vmatprep.subr.bf16.mxu0 %v991
        %1015 = vmatpush1.bf16.msra.mxu0 %v990
        %1016 = vmatprep.subr.bf16.mxu0 %v989
        %1017 = vmatpush1.bf16.msra.mxu0 %v988
        %1018 = vmatprep.subr.bf16.mxu0 %v987
        %1019 = vmatpush1.bf16.msra.mxu0 %v986
        %1020 = vmatprep.subr.bf16.mxu0 %v985
        %1021 = vmatpush1.bf16.msra.mxu0 %v984
        %1022 = vmatprep.subr.bf16.mxu0 %v983
        %1023 = vmatpush1.bf16.msra.mxu0 %v982
        %1024 = vmatprep.subr.bf16.mxu0 %v981
        %1025 = vmatpush1.bf16.msra.mxu0 %v980
        %1026 = vmatprep.subr.bf16.mxu0 0
        %1027 = vmatpush2.bf16.msra.mxu0 0
        %1028 = vmatprep.subr.bf16.mxu0 0
        %1029 = vmatpush2.bf16.msra.mxu0 0
        %1030 = vmatprep.subr.bf16.mxu0 0
        %1031 = vmatpush2.bf16.msra.mxu0 0
        %1032 = vmatprep.subr.bf16.mxu0 0
        %1033 = vmatpush2.bf16.msra.mxu0 0
        %1034 = vmatprep.subr.bf16.mxu0 0
        %1035 = vmatpush2.bf16.msra.mxu0 0
        %1036 = vmatprep.subr.bf16.mxu0 0
        %1037 = vmatpush2.bf16.msra.mxu0 0
        %1038 = vmatprep.subr.bf16.mxu0 0
        %1039 = vmatpush2.bf16.msra.mxu0 0
        %1040 = vmatprep.subr.bf16.mxu0 0
        %1041 = vmatpush2.bf16.msra.mxu0 0
        %1042 = vmatprep.mubr.bf16.mxu0 0
        %1043 = vmatmul.mubr.bf16.gmra.mxu0 %v1005
        %v1044 = vpop.f32.mrf.mxu0
        %v1045 = vadd.f32 0.0, %v1044
        %v1046 = vpop.f32.mrf.mxu0
        %v1047 = vadd.f32 0.0, %v1046
        %v1048 = vpop.f32.mrf.mxu0
        %v1049 = vadd.f32 0.0, %v1048
        %v1050 = vpop.f32.mrf.mxu0
        %v1051 = vadd.f32 0.0, %v1050
        %1052 = vmatprep.mubr.bf16.mxu0 0
        %1053 = vmatmul.mubr.bf16.gmra.mxu0 %v1008
        %v1054 = vpop.f32.mrf.mxu0
        %v1055 = vadd.f32 0.0, %v1054
        %v1056 = vpop.f32.mrf.mxu0
        %v1057 = vadd.f32 0.0, %v1056
        %v1058 = vpop.f32.mrf.mxu0
        %v1059 = vadd.f32 0.0, %v1058
        %v1060 = vpop.f32.mrf.mxu0
        %v1061 = vadd.f32 0.0, %v1060
        %1062 = vdwg.mxu0
        %v1063 = vadd.f32 %v915, %v1045
        %v1064 = vadd.f32 %v916, %v1047
        %v1065 = vadd.f32 %v917, %v1049
        %v1066 = vadd.f32 %v918, %v1051
        %v1067 = vadd.f32 %v919, %v1055
        %v1068 = vadd.f32 %v920, %v1057
        %v1069 = vadd.f32 %v921, %v1059
        %v1070 = vadd.f32 %v922, %v1061
        %s1071 = scalar_lea.vmem %s1, 384
        %v1072 = vld [vmem:[%s1071] sm:$0xff]
        %v1073 = vld [vmem:[%s1071 + $0x8] sm:$0xff]
        %v1074 = vld [vmem:[%s1071 + $0x10] sm:$0xff]
        %v1075 = vld [vmem:[%s1071 + $0x18] sm:$0xff]
        %v1076 = vld [vmem:[%s1071 + $0x20] sm:$0xff]
        %v1077 = vld [vmem:[%s1071 + $0x28] sm:$0xff]
        %v1078 = vld [vmem:[%s1071 + $0x30] sm:$0xff]
        %v1079 = vld [vmem:[%s1071 + $0x38] sm:$0xff]
        %v1080 = vld [vmem:[%s1071 + $0x40] sm:$0xff]
        %v1081 = vld [vmem:[%s1071 + $0x48] sm:$0xff]
        %v1082 = vld [vmem:[%s1071 + $0x50] sm:$0xff]
        %v1083 = vld [vmem:[%s1071 + $0x58] sm:$0xff]
        %vm1084 = vcmask 1045504
        %v1085 = vrot.slane %v497, 2
        %v1086 = vrot.slane %v498, 2
        %v1087 = vsel %vm1084, %v1085, %v1086
        %v1100 = vunpack.c.l.b16 %v1072
        %v1101 = vunpack.c.h.b16 %v1072
        %v1102 = vunpack.c.l.b16 %v1073
        %v1103 = vunpack.c.h.b16 %v1073
        %v1104 = vunpack.c.l.b16 %v1074
        %v1105 = vunpack.c.h.b16 %v1074
        %v1106 = vunpack.c.l.b16 %v1075
        %v1107 = vunpack.c.h.b16 %v1075
        %v1108 = vunpack.c.l.b16 %v1076
        %v1109 = vunpack.c.h.b16 %v1076
        %v1110 = vunpack.c.l.b16 %v1077
        %v1111 = vunpack.c.h.b16 %v1077
        %v1112 = vunpack.c.l.b16 %v1078
        %v1113 = vunpack.c.h.b16 %v1078
        %v1114 = vunpack.c.l.b16 %v1079
        %v1115 = vunpack.c.h.b16 %v1079
        %v1116 = vunpack.c.l.b16 %v1080
        %v1117 = vunpack.c.h.b16 %v1080
        %v1118 = vunpack.c.l.b16 %v1081
        %v1119 = vunpack.c.h.b16 %v1081
        %v1120 = vunpack.c.l.b16 %v1082
        %v1121 = vunpack.c.h.b16 %v1082
        %v1122 = vunpack.c.l.b16 %v1083
        %v1123 = vunpack.c.h.b16 %v1083
        %v1124 = vpack.c.b16 %v1102, %v1100
        %v1125 = vpack.c.b16 %v1103, %v1101
        %v1126 = vpack.c.b16 %v1106, %v1104
        %v1127 = vpack.c.b16 %v1107, %v1105
        %v1128 = vpack.c.b16 %v1110, %v1108
        %v1129 = vpack.c.b16 %v1111, %v1109
        %v1130 = vpack.c.b16 %v1114, %v1112
        %v1131 = vpack.c.b16 %v1115, %v1113
        %v1132 = vpack.c.b16 %v1118, %v1116
        %v1133 = vpack.c.b16 %v1119, %v1117
        %v1134 = vpack.c.b16 %v1122, %v1120
        %v1135 = vpack.c.b16 %v1123, %v1121
        %v1149 = vsel %vm600, %v1087, 0
        %v1152 = vsel %vm600, %v1086, 0
        %1154 = vmatprep.subr.bf16.mxu0 0
        %1155 = vmatpush1.bf16.msra.mxu0 0
        %1156 = vmatprep.subr.bf16.mxu0 0
        %1157 = vmatpush1.bf16.msra.mxu0 0
        %1158 = vmatprep.subr.bf16.mxu0 %v1135
        %1159 = vmatpush1.bf16.msra.mxu0 %v1134
        %1160 = vmatprep.subr.bf16.mxu0 %v1133
        %1161 = vmatpush1.bf16.msra.mxu0 %v1132
        %1162 = vmatprep.subr.bf16.mxu0 %v1131
        %1163 = vmatpush1.bf16.msra.mxu0 %v1130
        %1164 = vmatprep.subr.bf16.mxu0 %v1129
        %1165 = vmatpush1.bf16.msra.mxu0 %v1128
        %1166 = vmatprep.subr.bf16.mxu0 %v1127
        %1167 = vmatpush1.bf16.msra.mxu0 %v1126
        %1168 = vmatprep.subr.bf16.mxu0 %v1125
        %1169 = vmatpush1.bf16.msra.mxu0 %v1124
        %1170 = vmatprep.subr.bf16.mxu0 0
        %1171 = vmatpush2.bf16.msra.mxu0 0
        %1172 = vmatprep.subr.bf16.mxu0 0
        %1173 = vmatpush2.bf16.msra.mxu0 0
        %1174 = vmatprep.subr.bf16.mxu0 0
        %1175 = vmatpush2.bf16.msra.mxu0 0
        %1176 = vmatprep.subr.bf16.mxu0 0
        %1177 = vmatpush2.bf16.msra.mxu0 0
        %1178 = vmatprep.subr.bf16.mxu0 0
        %1179 = vmatpush2.bf16.msra.mxu0 0
        %1180 = vmatprep.subr.bf16.mxu0 0
        %1181 = vmatpush2.bf16.msra.mxu0 0
        %1182 = vmatprep.subr.bf16.mxu0 0
        %1183 = vmatpush2.bf16.msra.mxu0 0
        %1184 = vmatprep.subr.bf16.mxu0 0
        %1185 = vmatpush2.bf16.msra.mxu0 0
        %1186 = vmatprep.mubr.bf16.mxu0 0
        %1187 = vmatmul.mubr.bf16.gmra.mxu0 %v1149
        %v1188 = vpop.f32.mrf.mxu0
        %v1189 = vadd.f32 0.0, %v1188
        %v1190 = vpop.f32.mrf.mxu0
        %v1191 = vadd.f32 0.0, %v1190
        %v1192 = vpop.f32.mrf.mxu0
        %v1193 = vadd.f32 0.0, %v1192
        %v1194 = vpop.f32.mrf.mxu0
        %v1195 = vadd.f32 0.0, %v1194
        %1196 = vmatprep.mubr.bf16.mxu0 0
        %1197 = vmatmul.mubr.bf16.gmra.mxu0 %v1152
        %v1198 = vpop.f32.mrf.mxu0
        %v1199 = vadd.f32 0.0, %v1198
        %v1200 = vpop.f32.mrf.mxu0
        %v1201 = vadd.f32 0.0, %v1200
        %v1202 = vpop.f32.mrf.mxu0
        %v1203 = vadd.f32 0.0, %v1202
        %v1204 = vpop.f32.mrf.mxu0
        %v1205 = vadd.f32 0.0, %v1204
        %1206 = vdwg.mxu0
        %v1207 = vadd.f32 %v1063, %v1189
        %v1208 = vadd.f32 %v1064, %v1191
        %v1209 = vadd.f32 %v1065, %v1193
        %v1210 = vadd.f32 %v1066, %v1195
        %v1211 = vadd.f32 %v1067, %v1199
        %v1212 = vadd.f32 %v1068, %v1201
        %v1213 = vadd.f32 %v1069, %v1203
        %v1214 = vadd.f32 %v1070, %v1205
        %v1215 = vld [vmem:[%s2] sm:$0x3]
        %v1217 = vlaneseq
        %v1218 = vshrl.u32 %v1217, 7
        %v1219 = vsub.s32 0, %v1218
        %v1220 = vrot.slane %v1215, %v1219
        %v1221 = vlaneseq
        %v1222 = vshrl.u32 %v1221, 7
        %v1223 = vsub.s32 1, %v1222
        %v1224 = vrot.slane %v1215, %v1223
        %v1227 = vadd.f32 %v1207, %v1220
        %v1228 = vadd.f32 %v1208, %v1224
        %v1229 = vadd.f32 %v1209, %v1220
        %v1230 = vadd.f32 %v1210, %v1224
        %v1231 = vadd.f32 %v1211, %v1220
        %v1232 = vadd.f32 %v1212, %v1224
        %v1233 = vadd.f32 %v1213, %v1220
        %v1234 = vadd.f32 %v1214, %v1224
        %v1235 = vmax.f32 %v1227, 0.0
        %v1236 = vmax.f32 %v1228, 0.0
        %v1237 = vmax.f32 %v1229, 0.0
        %v1238 = vmax.f32 %v1230, 0.0
        %v1239 = vmax.f32 %v1231, 0.0
        %v1240 = vmax.f32 %v1232, 0.0
        %v1241 = vmax.f32 %v1233, 0.0
        %v1242 = vmax.f32 %v1234, 0.0
        %v1243 = vld [vmem:[%s3] sm:$0xf]
        %v1244 = vld [vmem:[%s3 + $0x4] sm:$0x7]
        %v1245 = vpack.c.bf16 %v1237, %v1235
        %v1246 = vpack.c.bf16 %v1238, %v1236
        %v1247 = vpack.c.bf16 %v1241, %v1239
        %v1248 = vpack.c.bf16 %v1242, %v1240
        %v1251 = vunpack.c.l.b16 %v1243
        %v1252 = vunpack.c.l.b16 %v1244
        %v1253 = vpack.c.b16 %v1252, %v1251
        %vm1254 = vcmask 228352
        %v1256 = vsel %vm1254, %v1253, 0
        %vm1258 = vcmask 1045504
        %v1260 = vsel %vm1258, %v1247, 0
        %v1263 = vsel %vm1258, %v1248, 0
        %1265 = vmatprep.subr.bf16.mxu0 0
        %1266 = vmatpush1.bf16.msra.mxu0 0
        %1267 = vmatprep.subr.bf16.mxu0 0
        %1268 = vmatpush1.bf16.msra.mxu0 0
        %1269 = vmatprep.subr.bf16.mxu0 0
        %1270 = vmatpush1.bf16.msra.mxu0 0
        %1271 = vmatprep.subr.bf16.mxu0 0
        %1272 = vmatpush1.bf16.msra.mxu0 0
        %1273 = vmatprep.subr.bf16.mxu0 0
        %1274 = vmatpush1.bf16.msra.mxu0 0
        %1275 = vmatprep.subr.bf16.mxu0 0
        %1276 = vmatpush1.bf16.msra.mxu0 0
        %1277 = vmatprep.subr.bf16.mxu0 %v1263
        %1278 = vmatpush1.bf16.msra.mxu0 %v1260
        %1279 = vmatprep.subr.bf16.mxu0 %v1246
        %1280 = vmatpush1.bf16.msra.mxu0 %v1245
        %1281 = vmatprep.subr.bf16.mxu0 0
        %1282 = vmatpush2.bf16.msra.mxu0 0
        %1283 = vmatprep.subr.bf16.mxu0 0
        %1284 = vmatpush2.bf16.msra.mxu0 0
        %1285 = vmatprep.subr.bf16.mxu0 0
        %1286 = vmatpush2.bf16.msra.mxu0 0
        %1287 = vmatprep.subr.bf16.mxu0 0
        %1288 = vmatpush2.bf16.msra.mxu0 0
        %1289 = vmatprep.subr.bf16.mxu0 0
        %1290 = vmatpush2.bf16.msra.mxu0 0
        %1291 = vmatprep.subr.bf16.mxu0 0
        %1292 = vmatpush2.bf16.msra.mxu0 0
        %1293 = vmatprep.subr.bf16.mxu0 0
        %1294 = vmatpush2.bf16.msra.mxu0 0
        %1295 = vmatprep.subr.bf16.mxu0 0
        %1296 = vmatpush2.bf16.msra.mxu0 0
        %1297 = vmatprep.mubr.bf16.mxu0 0
        %1298 = vmatmul.mubr.bf16.gmra.mxu0 %v1256
        %v1299 = vpop.f32.mrf.mxu0
        %v1300 = vadd.f32 0.0, %v1299
        %v1301 = vpop.f32.mrf.mxu0
        %v1302 = vadd.f32 0.0, %v1301
        %v1303 = vpop.f32.mrf.mxu0
        %v1304 = vadd.f32 0.0, %v1303
        %v1305 = vpop.f32.mrf.mxu0
        %v1306 = vadd.f32 0.0, %v1305
        %1307 = vdwg.mxu0
        %v1308 = vpack.c.bf16 %v1304, %v1300
        %v1309 = vpack.c.bf16 %v1306, %v1302
        %v1310 = vld [vmem:[%s4] sm:$0xf]
        %v1311 = vld [vmem:[%s4 + $0x4] sm:$0xf]
        %v1312 = vld [vmem:[%s4 + $0x8] sm:$0xf]
        %v1313 = vld [vmem:[%s4 + $0xc] sm:$0xf]
        %v1314 = vld [vmem:[%s4 + $0x10] sm:$0xf]
        %v1315 = vld [vmem:[%s4 + $0x14] sm:$0xf]
        %v1316 = vld [vmem:[%s4 + $0x18] sm:$0xf]
        %v1317 = vld [vmem:[%s4 + $0x1c] sm:$0xf]
        %v1318 = vld [vmem:[%s4 + $0x20] sm:$0xf]
        %v1319 = vld [vmem:[%s4 + $0x24] sm:$0xf]
        %v1320 = vld [vmem:[%s4 + $0x28] sm:$0xf]
        %v1321 = vld [vmem:[%s4 + $0x2c] sm:$0xf]
        %v1322 = vld [vmem:[%s4 + $0x30] sm:$0xf]
        %v1323 = vld [vmem:[%s4 + $0x34] sm:$0xf]
        %v1324 = vld [vmem:[%s4 + $0x38] sm:$0xf]
        %v1325 = vld [vmem:[%s4 + $0x3c] sm:$0xf]
        %v1326 = vld [vmem:[%s4 + $0x40] sm:$0xf]
        %v1327 = vld [vmem:[%s4 + $0x44] sm:$0xf]
        %v1328 = vld [vmem:[%s4 + $0x48] sm:$0xf]
        %v1329 = vld [vmem:[%s4 + $0x4c] sm:$0xf]
        %v1330 = vld [vmem:[%s4 + $0x50] sm:$0xf]
        %v1352 = vunpack.c.l.b16 %v1310
        %v1353 = vunpack.c.l.b16 %v1311
        %v1354 = vunpack.c.l.b16 %v1312
        %v1355 = vunpack.c.l.b16 %v1313
        %v1356 = vunpack.c.l.b16 %v1314
        %v1357 = vunpack.c.l.b16 %v1315
        %v1358 = vunpack.c.l.b16 %v1316
        %v1359 = vunpack.c.l.b16 %v1317
        %v1360 = vunpack.c.l.b16 %v1318
        %v1361 = vunpack.c.l.b16 %v1319
        %v1362 = vunpack.c.l.b16 %v1320
        %v1363 = vunpack.c.l.b16 %v1321
        %v1364 = vunpack.c.l.b16 %v1322
        %v1365 = vunpack.c.l.b16 %v1323
        %v1366 = vunpack.c.l.b16 %v1324
        %v1367 = vunpack.c.l.b16 %v1325
        %v1368 = vunpack.c.l.b16 %v1326
        %v1369 = vunpack.c.l.b16 %v1327
        %v1370 = vunpack.c.l.b16 %v1328
        %v1371 = vunpack.c.l.b16 %v1329
        %v1372 = vunpack.c.l.b16 %v1330
        %v1373 = vpack.c.b16 %v1353, %v1352
        %v1374 = vpack.c.b16 %v1355, %v1354
        %v1375 = vpack.c.b16 %v1357, %v1356
        %v1376 = vpack.c.b16 %v1359, %v1358
        %v1377 = vpack.c.b16 %v1361, %v1360
        %v1378 = vpack.c.b16 %v1363, %v1362
        %v1379 = vpack.c.b16 %v1365, %v1364
        %v1380 = vpack.c.b16 %v1367, %v1366
        %v1381 = vpack.c.b16 %v1369, %v1368
        %v1382 = vpack.c.b16 %v1371, %v1370
        %v1383 = vpack.c.b16 %v1372, %v1372
        %vm1394 = vcmask 326656
        %v1396 = vsel %vm1394, %v1309, 0
        %vm1398 = vcmask 1043456
        %v1400 = vsel %vm1398, %v1383, 0
        %1402 = vmatprep.subr.bf16.mxu0 0
        %1403 = vmatpush1.bf16.msra.mxu0 %v1380
        %1404 = vmatprep.subr.bf16.mxu0 0
        %1405 = vmatpush1.bf16.msra.mxu0 %v1379
        %1406 = vmatprep.subr.bf16.mxu0 0
        %1407 = vmatpush1.bf16.msra.mxu0 %v1378
        %1408 = vmatprep.subr.bf16.mxu0 0
        %1409 = vmatpush1.bf16.msra.mxu0 %v1377
        %1410 = vmatprep.subr.bf16.mxu0 0
        %1411 = vmatpush1.bf16.msra.mxu0 %v1376
        %1412 = vmatprep.subr.bf16.mxu0 0
        %1413 = vmatpush1.bf16.msra.mxu0 %v1375
        %1414 = vmatprep.subr.bf16.mxu0 0
        %1415 = vmatpush1.bf16.msra.mxu0 %v1374
        %1416 = vmatprep.subr.bf16.mxu0 0
        %1417 = vmatpush1.bf16.msra.mxu0 %v1373
        %1418 = vmatprep.subr.bf16.mxu0 0
        %1419 = vmatpush2.bf16.msra.mxu0 0
        %1420 = vmatprep.subr.bf16.mxu0 0
        %1421 = vmatpush2.bf16.msra.mxu0 0
        %1422 = vmatprep.subr.bf16.mxu0 0
        %1423 = vmatpush2.bf16.msra.mxu0 0
        %1424 = vmatprep.subr.bf16.mxu0 0
        %1425 = vmatpush2.bf16.msra.mxu0 0
        %1426 = vmatprep.subr.bf16.mxu0 0
        %1427 = vmatpush2.bf16.msra.mxu0 0
        %1428 = vmatprep.subr.bf16.mxu0 0
        %1429 = vmatpush2.bf16.msra.mxu0 %v1400
        %1430 = vmatprep.subr.bf16.mxu0 0
        %1431 = vmatpush2.bf16.msra.mxu0 %v1382
        %1432 = vmatprep.subr.bf16.mxu0 0
        %1433 = vmatpush2.bf16.msra.mxu0 %v1381
        %1434 = vmatprep.mubr.bf16.mxu0 %v1396
        %1435 = vmatmul.mubr.bf16.gmra.mxu0 %v1308
        %v1436 = vpop.f32.mrf.mxu0
        %v1437 = vadd.f32 0.0, %v1436
        %v1438 = vpop.f32.mrf.mxu0
        %v1439 = vpop.f32.mrf.mxu0
        %v1440 = vadd.f32 0.0, %v1439
        %v1441 = vpop.f32.mrf.mxu0
        %1442 = vdwg.mxu0
        %v1443 = vpack.c.bf16 %v1440, %v1437
        %v1444 = vld [vmem:[%s5] sm:$0xff]
        %v1445 = vld [vmem:[%s5 + $0x8] sm:$0xff]
        %v1446 = vld [vmem:[%s5 + $0x10] sm:$0xff]
        %v1447 = vld [vmem:[%s5 + $0x18] sm:$0xff]
        %v1448 = vld [vmem:[%s5 + $0x20] sm:$0xff]
        %v1449 = vld [vmem:[%s5 + $0x28] sm:$0xff]
        %v1450 = vld [vmem:[%s5 + $0x30] sm:$0xff]
        %v1451 = vld [vmem:[%s5 + $0x38] sm:$0xff]
        %v1452 = vld [vmem:[%s5 + $0x40] sm:$0xff]
        %v1453 = vld [vmem:[%s5 + $0x48] sm:$0xff]
        %v1454 = vld [vmem:[%s5 + $0x50] sm:$0x33]
        %s1455 = scalar_lea.vmem %s5, 88
        %v1456 = vld [vmem:[%s1455] sm:$0xff]
        %v1457 = vld [vmem:[%s1455 + $0x8] sm:$0xff]
        %v1458 = vld [vmem:[%s1455 + $0x10] sm:$0xff]
        %v1459 = vld [vmem:[%s1455 + $0x18] sm:$0xff]
        %v1460 = vld [vmem:[%s1455 + $0x20] sm:$0xff]
        %v1461 = vld [vmem:[%s1455 + $0x28] sm:$0xff]
        %v1462 = vld [vmem:[%s1455 + $0x30] sm:$0xff]
        %v1463 = vld [vmem:[%s1455 + $0x38] sm:$0xff]
        %v1464 = vld [vmem:[%s1455 + $0x40] sm:$0xff]
        %v1465 = vld [vmem:[%s1455 + $0x48] sm:$0xff]
        %v1466 = vld [vmem:[%s1455 + $0x50] sm:$0x33]
        %v1468 = vshrl.u32 %v1443, 16
        %v1470 = vshll.u32 %v1443, 16
        %v1472 = vrot.slane %v1470, 1
        %v1473 = vor.u32 %v1468, %v1472
        %v1485 = vunpack.c.l.b16 %v1456
        %v1486 = vunpack.c.h.b16 %v1456
        %v1487 = vunpack.c.l.b16 %v1457
        %v1488 = vunpack.c.h.b16 %v1457
        %v1489 = vunpack.c.l.b16 %v1458
        %v1490 = vunpack.c.h.b16 %v1458
        %v1491 = vunpack.c.l.b16 %v1459
        %v1492 = vunpack.c.h.b16 %v1459
        %v1493 = vunpack.c.l.b16 %v1460
        %v1494 = vunpack.c.h.b16 %v1460
        %v1495 = vunpack.c.l.b16 %v1461
        %v1496 = vunpack.c.h.b16 %v1461
        %v1497 = vunpack.c.l.b16 %v1462
        %v1498 = vunpack.c.h.b16 %v1462
        %v1499 = vunpack.c.l.b16 %v1463
        %v1500 = vunpack.c.h.b16 %v1463
        %v1501 = vunpack.c.l.b16 %v1464
        %v1502 = vunpack.c.h.b16 %v1464
        %v1503 = vunpack.c.l.b16 %v1465
        %v1504 = vunpack.c.h.b16 %v1465
        %v1505 = vunpack.c.l.b16 %v1466
        %v1506 = vunpack.c.h.b16 %v1466
        %v1507 = vpack.c.b16 %v1487, %v1485
        %v1508 = vpack.c.b16 %v1488, %v1486
        %v1509 = vpack.c.b16 %v1491, %v1489
        %v1510 = vpack.c.b16 %v1492, %v1490
        %v1511 = vpack.c.b16 %v1495, %v1493
        %v1512 = vpack.c.b16 %v1496, %v1494
        %v1513 = vpack.c.b16 %v1499, %v1497
        %v1514 = vpack.c.b16 %v1500, %v1498
        %v1515 = vpack.c.b16 %v1503, %v1501
        %v1516 = vpack.c.b16 %v1504, %v1502
        %v1517 = vpack.c.b16 %v1505, %v1505
        %v1518 = vpack.c.b16 %v1506, %v1506
        %vm1529 = vcmask 687104
        %v1531 = vsel %vm1529, %v1473, 0
        %vm1533 = vcmask 1041408
        %v1535 = vsel %vm1533, %v1517, 0
        %v1538 = vsel %vm1533, %v1518, 0
        %1540 = vmatprep.subr.bf16.mxu0 0
        %1541 = vmatpush1.bf16.msra.mxu0 0
        %1542 = vmatprep.subr.bf16.mxu0 0
        %1543 = vmatpush1.bf16.msra.mxu0 0
        %1544 = vmatprep.subr.bf16.mxu0 %v1538
        %1545 = vmatpush1.bf16.msra.mxu0 %v1535
        %1546 = vmatprep.subr.bf16.mxu0 %v1516
        %1547 = vmatpush1.bf16.msra.mxu0 %v1515
        %1548 = vmatprep.subr.bf16.mxu0 %v1514
        %1549 = vmatpush1.bf16.msra.mxu0 %v1513
        %1550 = vmatprep.subr.bf16.mxu0 %v1512
        %1551 = vmatpush1.bf16.msra.mxu0 %v1511
        %1552 = vmatprep.subr.bf16.mxu0 %v1510
        %1553 = vmatpush1.bf16.msra.mxu0 %v1509
        %1554 = vmatprep.subr.bf16.mxu0 %v1508
        %1555 = vmatpush1.bf16.msra.mxu0 %v1507
        %1556 = vmatprep.subr.bf16.mxu0 0
        %1557 = vmatpush2.bf16.msra.mxu0 0
        %1558 = vmatprep.subr.bf16.mxu0 0
        %1559 = vmatpush2.bf16.msra.mxu0 0
        %1560 = vmatprep.subr.bf16.mxu0 0
        %1561 = vmatpush2.bf16.msra.mxu0 0
        %1562 = vmatprep.subr.bf16.mxu0 0
        %1563 = vmatpush2.bf16.msra.mxu0 0
        %1564 = vmatprep.subr.bf16.mxu0 0
        %1565 = vmatpush2.bf16.msra.mxu0 0
        %1566 = vmatprep.subr.bf16.mxu0 0
        %1567 = vmatpush2.bf16.msra.mxu0 0
        %1568 = vmatprep.subr.bf16.mxu0 0
        %1569 = vmatpush2.bf16.msra.mxu0 0
        %1570 = vmatprep.subr.bf16.mxu0 0
        %1571 = vmatpush2.bf16.msra.mxu0 0
        %1572 = vmatprep.mubr.bf16.mxu0 0
        %1573 = vmatmul.mubr.bf16.gmra.mxu0 %v1531
        %v1574 = vpop.f32.mrf.mxu0
        %v1575 = vadd.f32 0.0, %v1574
        %v1576 = vpop.f32.mrf.mxu0
        %v1577 = vadd.f32 0.0, %v1576
        %v1578 = vpop.f32.mrf.mxu0
        %v1579 = vadd.f32 0.0, %v1578
        %v1580 = vpop.f32.mrf.mxu0
        %v1581 = vadd.f32 0.0, %v1580
        %1582 = vdwg.mxu0
        %v1594 = vunpack.c.l.b16 %v1444
        %v1595 = vunpack.c.h.b16 %v1444
        %v1596 = vunpack.c.l.b16 %v1445
        %v1597 = vunpack.c.h.b16 %v1445
        %v1598 = vunpack.c.l.b16 %v1446
        %v1599 = vunpack.c.h.b16 %v1446
        %v1600 = vunpack.c.l.b16 %v1447
        %v1601 = vunpack.c.h.b16 %v1447
        %v1602 = vunpack.c.l.b16 %v1448
        %v1603 = vunpack.c.h.b16 %v1448
        %v1604 = vunpack.c.l.b16 %v1449
        %v1605 = vunpack.c.h.b16 %v1449
        %v1606 = vunpack.c.l.b16 %v1450
        %v1607 = vunpack.c.h.b16 %v1450
        %v1608 = vunpack.c.l.b16 %v1451
        %v1609 = vunpack.c.h.b16 %v1451
        %v1610 = vunpack.c.l.b16 %v1452
        %v1611 = vunpack.c.h.b16 %v1452
        %v1612 = vunpack.c.l.b16 %v1453
        %v1613 = vunpack.c.h.b16 %v1453
        %v1614 = vunpack.c.l.b16 %v1454
        %v1615 = vunpack.c.h.b16 %v1454
        %v1616 = vpack.c.b16 %v1596, %v1594
        %v1617 = vpack.c.b16 %v1597, %v1595
        %v1618 = vpack.c.b16 %v1600, %v1598
        %v1619 = vpack.c.b16 %v1601, %v1599
        %v1620 = vpack.c.b16 %v1604, %v1602
        %v1621 = vpack.c.b16 %v1605, %v1603
        %v1622 = vpack.c.b16 %v1608, %v1606
        %v1623 = vpack.c.b16 %v1609, %v1607
        %v1624 = vpack.c.b16 %v1612, %v1610
        %v1625 = vpack.c.b16 %v1613, %v1611
        %v1626 = vpack.c.b16 %v1614, %v1614
        %v1627 = vpack.c.b16 %v1615, %v1615
        %v1638 = vsel %vm1529, %v1443, 0
        %v1641 = vsel %vm1533, %v1626, 0
        %v1644 = vsel %vm1533, %v1627, 0
        %1646 = vmatprep.subr.bf16.mxu0 0
        %1647 = vmatpush1.bf16.msra.mxu0 0
        %1648 = vmatprep.subr.bf16.mxu0 0
        %1649 = vmatpush1.bf16.msra.mxu0 0
        %1650 = vmatprep.subr.bf16.mxu0 %v1644
        %1651 = vmatpush1.bf16.msra.mxu0 %v1641
        %1652 = vmatprep.subr.bf16.mxu0 %v1625
        %1653 = vmatpush1.bf16.msra.mxu0 %v1624
        %1654 = vmatprep.subr.bf16.mxu0 %v1623
        %1655 = vmatpush1.bf16.msra.mxu0 %v1622
        %1656 = vmatprep.subr.bf16.mxu0 %v1621
        %1657 = vmatpush1.bf16.msra.mxu0 %v1620
        %1658 = vmatprep.subr.bf16.mxu0 %v1619
        %1659 = vmatpush1.bf16.msra.mxu0 %v1618
        %1660 = vmatprep.subr.bf16.mxu0 %v1617
        %1661 = vmatpush1.bf16.msra.mxu0 %v1616
        %1662 = vmatprep.subr.bf16.mxu0 0
        %1663 = vmatpush2.bf16.msra.mxu0 0
        %1664 = vmatprep.subr.bf16.mxu0 0
        %1665 = vmatpush2.bf16.msra.mxu0 0
        %1666 = vmatprep.subr.bf16.mxu0 0
        %1667 = vmatpush2.bf16.msra.mxu0 0
        %1668 = vmatprep.subr.bf16.mxu0 0
        %1669 = vmatpush2.bf16.msra.mxu0 0
        %1670 = vmatprep.subr.bf16.mxu0 0
        %1671 = vmatpush2.bf16.msra.mxu0 0
        %1672 = vmatprep.subr.bf16.mxu0 0
        %1673 = vmatpush2.bf16.msra.mxu0 0
        %1674 = vmatprep.subr.bf16.mxu0 0
        %1675 = vmatpush2.bf16.msra.mxu0 0
        %1676 = vmatprep.subr.bf16.mxu0 0
        %1677 = vmatpush2.bf16.msra.mxu0 0
        %1678 = vmatprep.mubr.bf16.mxu0 0
        %1679 = vmatmul.mubr.bf16.gmra.mxu0 %v1638
        %v1680 = vpop.f32.mrf.mxu0
        %v1681 = vadd.f32 %v1575, %v1680
        %v1682 = vpop.f32.mrf.mxu0
        %v1683 = vadd.f32 %v1577, %v1682
        %v1684 = vpop.f32.mrf.mxu0
        %v1685 = vadd.f32 %v1579, %v1684
        %v1686 = vpop.f32.mrf.mxu0
        %v1687 = vadd.f32 %v1581, %v1686
        %1688 = vdwg.mxu0
        %s1689 = scalar_lea.vmem %s5, 176
        %v1690 = vld [vmem:[%s1689] sm:$0xff]
        %v1691 = vld [vmem:[%s1689 + $0x8] sm:$0xff]
        %v1692 = vld [vmem:[%s1689 + $0x10] sm:$0xff]
        %v1693 = vld [vmem:[%s1689 + $0x18] sm:$0xff]
        %v1694 = vld [vmem:[%s1689 + $0x20] sm:$0xff]
        %v1695 = vld [vmem:[%s1689 + $0x28] sm:$0xff]
        %v1696 = vld [vmem:[%s1689 + $0x30] sm:$0xff]
        %v1697 = vld [vmem:[%s1689 + $0x38] sm:$0xff]
        %v1698 = vld [vmem:[%s1689 + $0x40] sm:$0xff]
        %v1699 = vld [vmem:[%s1689 + $0x48] sm:$0xff]
        %v1700 = vld [vmem:[%s1689 + $0x50] sm:$0x33]
        %v1702 = vrot.slane %v1443, 1
        %v1714 = vunpack.c.l.b16 %v1690
        %v1715 = vunpack.c.h.b16 %v1690
        %v1716 = vunpack.c.l.b16 %v1691
        %v1717 = vunpack.c.h.b16 %v1691
        %v1718 = vunpack.c.l.b16 %v1692
        %v1719 = vunpack.c.h.b16 %v1692
        %v1720 = vunpack.c.l.b16 %v1693
        %v1721 = vunpack.c.h.b16 %v1693
        %v1722 = vunpack.c.l.b16 %v1694
        %v1723 = vunpack.c.h.b16 %v1694
        %v1724 = vunpack.c.l.b16 %v1695
        %v1725 = vunpack.c.h.b16 %v1695
        %v1726 = vunpack.c.l.b16 %v1696
        %v1727 = vunpack.c.h.b16 %v1696
        %v1728 = vunpack.c.l.b16 %v1697
        %v1729 = vunpack.c.h.b16 %v1697
        %v1730 = vunpack.c.l.b16 %v1698
        %v1731 = vunpack.c.h.b16 %v1698
        %v1732 = vunpack.c.l.b16 %v1699
        %v1733 = vunpack.c.h.b16 %v1699
        %v1734 = vunpack.c.l.b16 %v1700
        %v1735 = vunpack.c.h.b16 %v1700
        %v1736 = vpack.c.b16 %v1716, %v1714
        %v1737 = vpack.c.b16 %v1717, %v1715
        %v1738 = vpack.c.b16 %v1720, %v1718
        %v1739 = vpack.c.b16 %v1721, %v1719
        %v1740 = vpack.c.b16 %v1724, %v1722
        %v1741 = vpack.c.b16 %v1725, %v1723
        %v1742 = vpack.c.b16 %v1728, %v1726
        %v1743 = vpack.c.b16 %v1729, %v1727
        %v1744 = vpack.c.b16 %v1732, %v1730
        %v1745 = vpack.c.b16 %v1733, %v1731
        %v1746 = vpack.c.b16 %v1734, %v1734
        %v1747 = vpack.c.b16 %v1735, %v1735
        %v1759 = vsel %vm1529, %v1702, 0
        %v1762 = vsel %vm1533, %v1746, 0
        %v1765 = vsel %vm1533, %v1747, 0
        %1767 = vmatprep.subr.bf16.mxu0 0
        %1768 = vmatpush1.bf16.msra.mxu0 0
        %1769 = vmatprep.subr.bf16.mxu0 0
        %1770 = vmatpush1.bf16.msra.mxu0 0
        %1771 = vmatprep.subr.bf16.mxu0 %v1765
        %1772 = vmatpush1.bf16.msra.mxu0 %v1762
        %1773 = vmatprep.subr.bf16.mxu0 %v1745
        %1774 = vmatpush1.bf16.msra.mxu0 %v1744
        %1775 = vmatprep.subr.bf16.mxu0 %v1743
        %1776 = vmatpush1.bf16.msra.mxu0 %v1742
        %1777 = vmatprep.subr.bf16.mxu0 %v1741
        %1778 = vmatpush1.bf16.msra.mxu0 %v1740
        %1779 = vmatprep.subr.bf16.mxu0 %v1739
        %1780 = vmatpush1.bf16.msra.mxu0 %v1738
        %1781 = vmatprep.subr.bf16.mxu0 %v1737
        %1782 = vmatpush1.bf16.msra.mxu0 %v1736
        %1783 = vmatprep.subr.bf16.mxu0 0
        %1784 = vmatpush2.bf16.msra.mxu0 0
        %1785 = vmatprep.subr.bf16.mxu0 0
        %1786 = vmatpush2.bf16.msra.mxu0 0
        %1787 = vmatprep.subr.bf16.mxu0 0
        %1788 = vmatpush2.bf16.msra.mxu0 0
        %1789 = vmatprep.subr.bf16.mxu0 0
        %1790 = vmatpush2.bf16.msra.mxu0 0
        %1791 = vmatprep.subr.bf16.mxu0 0
        %1792 = vmatpush2.bf16.msra.mxu0 0
        %1793 = vmatprep.subr.bf16.mxu0 0
        %1794 = vmatpush2.bf16.msra.mxu0 0
        %1795 = vmatprep.subr.bf16.mxu0 0
        %1796 = vmatpush2.bf16.msra.mxu0 0
        %1797 = vmatprep.subr.bf16.mxu0 0
        %1798 = vmatpush2.bf16.msra.mxu0 0
        %1799 = vmatprep.mubr.bf16.mxu0 0
        %1800 = vmatmul.mubr.bf16.gmra.mxu0 %v1759
        %v1801 = vpop.f32.mrf.mxu0
        %v1802 = vadd.f32 0.0, %v1801
        %v1803 = vpop.f32.mrf.mxu0
        %v1804 = vadd.f32 0.0, %v1803
        %v1805 = vpop.f32.mrf.mxu0
        %v1806 = vadd.f32 0.0, %v1805
        %v1807 = vpop.f32.mrf.mxu0
        %v1808 = vadd.f32 0.0, %v1807
        %1809 = vdwg.mxu0
        %v1810 = vadd.f32 %v1681, %v1802
        %v1811 = vadd.f32 %v1683, %v1804
        %v1812 = vadd.f32 %v1685, %v1806
        %v1813 = vadd.f32 %v1687, %v1808
        %s1814 = scalar_lea.vmem %s5, 264
        %v1815 = vld [vmem:[%s1814] sm:$0xff]
        %v1816 = vld [vmem:[%s1814 + $0x8] sm:$0xff]
        %v1817 = vld [vmem:[%s1814 + $0x10] sm:$0xff]
        %v1818 = vld [vmem:[%s1814 + $0x18] sm:$0xff]
        %v1819 = vld [vmem:[%s1814 + $0x20] sm:$0xff]
        %v1820 = vld [vmem:[%s1814 + $0x28] sm:$0xff]
        %v1821 = vld [vmem:[%s1814 + $0x30] sm:$0xff]
        %v1822 = vld [vmem:[%s1814 + $0x38] sm:$0xff]
        %v1823 = vld [vmem:[%s1814 + $0x40] sm:$0xff]
        %v1824 = vld [vmem:[%s1814 + $0x48] sm:$0xff]
        %v1825 = vld [vmem:[%s1814 + $0x50] sm:$0x33]
        %v1826 = vrot.slane %v1468, 1
        %v1827 = vrot.slane %v1470, 2
        %v1828 = vor.u32 %v1826, %v1827
        %v1840 = vunpack.c.l.b16 %v1815
        %v1841 = vunpack.c.h.b16 %v1815
        %v1842 = vunpack.c.l.b16 %v1816
        %v1843 = vunpack.c.h.b16 %v1816
        %v1844 = vunpack.c.l.b16 %v1817
        %v1845 = vunpack.c.h.b16 %v1817
        %v1846 = vunpack.c.l.b16 %v1818
        %v1847 = vunpack.c.h.b16 %v1818
        %v1848 = vunpack.c.l.b16 %v1819
        %v1849 = vunpack.c.h.b16 %v1819
        %v1850 = vunpack.c.l.b16 %v1820
        %v1851 = vunpack.c.h.b16 %v1820
        %v1852 = vunpack.c.l.b16 %v1821
        %v1853 = vunpack.c.h.b16 %v1821
        %v1854 = vunpack.c.l.b16 %v1822
        %v1855 = vunpack.c.h.b16 %v1822
        %v1856 = vunpack.c.l.b16 %v1823
        %v1857 = vunpack.c.h.b16 %v1823
        %v1858 = vunpack.c.l.b16 %v1824
        %v1859 = vunpack.c.h.b16 %v1824
        %v1860 = vunpack.c.l.b16 %v1825
        %v1861 = vunpack.c.h.b16 %v1825
        %v1862 = vpack.c.b16 %v1842, %v1840
        %v1863 = vpack.c.b16 %v1843, %v1841
        %v1864 = vpack.c.b16 %v1846, %v1844
        %v1865 = vpack.c.b16 %v1847, %v1845
        %v1866 = vpack.c.b16 %v1850, %v1848
        %v1867 = vpack.c.b16 %v1851, %v1849
        %v1868 = vpack.c.b16 %v1854, %v1852
        %v1869 = vpack.c.b16 %v1855, %v1853
        %v1870 = vpack.c.b16 %v1858, %v1856
        %v1871 = vpack.c.b16 %v1859, %v1857
        %v1872 = vpack.c.b16 %v1860, %v1860
        %v1873 = vpack.c.b16 %v1861, %v1861
        %v1885 = vsel %vm1529, %v1828, 0
        %v1888 = vsel %vm1533, %v1872, 0
        %v1891 = vsel %vm1533, %v1873, 0
        %1893 = vmatprep.subr.bf16.mxu0 0
        %1894 = vmatpush1.bf16.msra.mxu0 0
        %1895 = vmatprep.subr.bf16.mxu0 0
        %1896 = vmatpush1.bf16.msra.mxu0 0
        %1897 = vmatprep.subr.bf16.mxu0 %v1891
        %1898 = vmatpush1.bf16.msra.mxu0 %v1888
        %1899 = vmatprep.subr.bf16.mxu0 %v1871
        %1900 = vmatpush1.bf16.msra.mxu0 %v1870
        %1901 = vmatprep.subr.bf16.mxu0 %v1869
        %1902 = vmatpush1.bf16.msra.mxu0 %v1868
        %1903 = vmatprep.subr.bf16.mxu0 %v1867
        %1904 = vmatpush1.bf16.msra.mxu0 %v1866
        %1905 = vmatprep.subr.bf16.mxu0 %v1865
        %1906 = vmatpush1.bf16.msra.mxu0 %v1864
        %1907 = vmatprep.subr.bf16.mxu0 %v1863
        %1908 = vmatpush1.bf16.msra.mxu0 %v1862
        %1909 = vmatprep.subr.bf16.mxu0 0
        %1910 = vmatpush2.bf16.msra.mxu0 0
        %1911 = vmatprep.subr.bf16.mxu0 0
        %1912 = vmatpush2.bf16.msra.mxu0 0
        %1913 = vmatprep.subr.bf16.mxu0 0
        %1914 = vmatpush2.bf16.msra.mxu0 0
        %1915 = vmatprep.subr.bf16.mxu0 0
        %1916 = vmatpush2.bf16.msra.mxu0 0
        %1917 = vmatprep.subr.bf16.mxu0 0
        %1918 = vmatpush2.bf16.msra.mxu0 0
        %1919 = vmatprep.subr.bf16.mxu0 0
        %1920 = vmatpush2.bf16.msra.mxu0 0
        %1921 = vmatprep.subr.bf16.mxu0 0
        %1922 = vmatpush2.bf16.msra.mxu0 0
        %1923 = vmatprep.subr.bf16.mxu0 0
        %1924 = vmatpush2.bf16.msra.mxu0 0
        %1925 = vmatprep.mubr.bf16.mxu0 0
        %1926 = vmatmul.mubr.bf16.gmra.mxu0 %v1885
        %v1927 = vpop.f32.mrf.mxu0
        %v1928 = vadd.f32 0.0, %v1927
        %v1929 = vpop.f32.mrf.mxu0
        %v1930 = vadd.f32 0.0, %v1929
        %v1931 = vpop.f32.mrf.mxu0
        %v1932 = vadd.f32 0.0, %v1931
        %v1933 = vpop.f32.mrf.mxu0
        %v1934 = vadd.f32 0.0, %v1933
        %1935 = vdwg.mxu0
        %v1936 = vadd.f32 %v1810, %v1928
        %v1937 = vadd.f32 %v1811, %v1930
        %v1938 = vadd.f32 %v1812, %v1932
        %v1939 = vadd.f32 %v1813, %v1934
        %s1940 = scalar_lea.vmem %s5, 352
        %v1941 = vld [vmem:[%s1940] sm:$0xff]
        %v1942 = vld [vmem:[%s1940 + $0x8] sm:$0xff]
        %v1943 = vld [vmem:[%s1940 + $0x10] sm:$0xff]
        %v1944 = vld [vmem:[%s1940 + $0x18] sm:$0xff]
        %v1945 = vld [vmem:[%s1940 + $0x20] sm:$0xff]
        %v1946 = vld [vmem:[%s1940 + $0x28] sm:$0xff]
        %v1947 = vld [vmem:[%s1940 + $0x30] sm:$0xff]
        %v1948 = vld [vmem:[%s1940 + $0x38] sm:$0xff]
        %v1949 = vld [vmem:[%s1940 + $0x40] sm:$0xff]
        %v1950 = vld [vmem:[%s1940 + $0x48] sm:$0xff]
        %v1951 = vld [vmem:[%s1940 + $0x50] sm:$0x33]
        %v1952 = vrot.slane %v1443, 2
        %v1964 = vunpack.c.l.b16 %v1941
        %v1965 = vunpack.c.h.b16 %v1941
        %v1966 = vunpack.c.l.b16 %v1942
        %v1967 = vunpack.c.h.b16 %v1942
        %v1968 = vunpack.c.l.b16 %v1943
        %v1969 = vunpack.c.h.b16 %v1943
        %v1970 = vunpack.c.l.b16 %v1944
        %v1971 = vunpack.c.h.b16 %v1944
        %v1972 = vunpack.c.l.b16 %v1945
        %v1973 = vunpack.c.h.b16 %v1945
        %v1974 = vunpack.c.l.b16 %v1946
        %v1975 = vunpack.c.h.b16 %v1946
        %v1976 = vunpack.c.l.b16 %v1947
        %v1977 = vunpack.c.h.b16 %v1947
        %v1978 = vunpack.c.l.b16 %v1948
        %v1979 = vunpack.c.h.b16 %v1948
        %v1980 = vunpack.c.l.b16 %v1949
        %v1981 = vunpack.c.h.b16 %v1949
        %v1982 = vunpack.c.l.b16 %v1950
        %v1983 = vunpack.c.h.b16 %v1950
        %v1984 = vunpack.c.l.b16 %v1951
        %v1985 = vunpack.c.h.b16 %v1951
        %v1986 = vpack.c.b16 %v1966, %v1964
        %v1987 = vpack.c.b16 %v1967, %v1965
        %v1988 = vpack.c.b16 %v1970, %v1968
        %v1989 = vpack.c.b16 %v1971, %v1969
        %v1990 = vpack.c.b16 %v1974, %v1972
        %v1991 = vpack.c.b16 %v1975, %v1973
        %v1992 = vpack.c.b16 %v1978, %v1976
        %v1993 = vpack.c.b16 %v1979, %v1977
        %v1994 = vpack.c.b16 %v1982, %v1980
        %v1995 = vpack.c.b16 %v1983, %v1981
        %v1996 = vpack.c.b16 %v1984, %v1984
        %v1997 = vpack.c.b16 %v1985, %v1985
        %v2009 = vsel %vm1529, %v1952, 0
        %v2012 = vsel %vm1533, %v1996, 0
        %v2015 = vsel %vm1533, %v1997, 0
        %2017 = vmatprep.subr.bf16.mxu0 0
        %2018 = vmatpush1.bf16.msra.mxu0 0
        %2019 = vmatprep.subr.bf16.mxu0 0
        %2020 = vmatpush1.bf16.msra.mxu0 0
        %2021 = vmatprep.subr.bf16.mxu0 %v2015
        %2022 = vmatpush1.bf16.msra.mxu0 %v2012
        %2023 = vmatprep.subr.bf16.mxu0 %v1995
        %2024 = vmatpush1.bf16.msra.mxu0 %v1994
        %2025 = vmatprep.subr.bf16.mxu0 %v1993
        %2026 = vmatpush1.bf16.msra.mxu0 %v1992
        %2027 = vmatprep.subr.bf16.mxu0 %v1991
        %2028 = vmatpush1.bf16.msra.mxu0 %v1990
        %2029 = vmatprep.subr.bf16.mxu0 %v1989
        %2030 = vmatpush1.bf16.msra.mxu0 %v1988
        %2031 = vmatprep.subr.bf16.mxu0 %v1987
        %2032 = vmatpush1.bf16.msra.mxu0 %v1986
        %2033 = vmatprep.subr.bf16.mxu0 0
        %2034 = vmatpush2.bf16.msra.mxu0 0
        %2035 = vmatprep.subr.bf16.mxu0 0
        %2036 = vmatpush2.bf16.msra.mxu0 0
        %2037 = vmatprep.subr.bf16.mxu0 0
        %2038 = vmatpush2.bf16.msra.mxu0 0
        %2039 = vmatprep.subr.bf16.mxu0 0
        %2040 = vmatpush2.bf16.msra.mxu0 0
        %2041 = vmatprep.subr.bf16.mxu0 0
        %2042 = vmatpush2.bf16.msra.mxu0 0
        %2043 = vmatprep.subr.bf16.mxu0 0
        %2044 = vmatpush2.bf16.msra.mxu0 0
        %2045 = vmatprep.subr.bf16.mxu0 0
        %2046 = vmatpush2.bf16.msra.mxu0 0
        %2047 = vmatprep.subr.bf16.mxu0 0
        %2048 = vmatpush2.bf16.msra.mxu0 0
        %2049 = vmatprep.mubr.bf16.mxu0 0
        %2050 = vmatmul.mubr.bf16.gmra.mxu0 %v2009
        %v2051 = vpop.f32.mrf.mxu0
        %v2052 = vadd.f32 0.0, %v2051
        %v2053 = vpop.f32.mrf.mxu0
        %v2054 = vadd.f32 0.0, %v2053
        %v2055 = vpop.f32.mrf.mxu0
        %v2056 = vadd.f32 0.0, %v2055
        %v2057 = vpop.f32.mrf.mxu0
        %v2058 = vadd.f32 0.0, %v2057
        %2059 = vdwg.mxu0
        %v2060 = vadd.f32 %v1936, %v2052
        %v2061 = vadd.f32 %v1937, %v2054
        %v2062 = vadd.f32 %v1938, %v2056
        %v2063 = vadd.f32 %v1939, %v2058
        %v2064 = vld [vmem:[%s6] sm:$0x3]
        %v2066 = vlaneseq
        %v2067 = vshrl.u32 %v2066, 7
        %v2068 = vsub.s32 0, %v2067
        %v2069 = vrot.slane %v2064, %v2068
        %v2070 = vlaneseq
        %v2071 = vshrl.u32 %v2070, 7
        %v2072 = vsub.s32 1, %v2071
        %v2073 = vrot.slane %v2064, %v2072
        %v2076 = vadd.f32 %v2060, %v2069
        %v2077 = vadd.f32 %v2061, %v2073
        %v2078 = vadd.f32 %v2062, %v2069
        %v2079 = vadd.f32 %v2063, %v2073
        %v2080 = vmax.f32 %v2076, 0.0
        %v2081 = vmax.f32 %v2077, 0.0
        %v2082 = vmax.f32 %v2078, 0.0
        %v2083 = vmax.f32 %v2079, 0.0
        %v2084 = vld [vmem:[%s7] sm:$0x7]
        %v2085 = vpack.c.bf16 %v2082, %v2080
        %v2086 = vpack.c.bf16 %v2083, %v2081
        %vm2087 = vcmask 80896
        %v2089 = vsel %vm2087, %v2084, 0
        %vm2091 = vcmask 1044480
        %v2093 = vsel %vm2091, %v2085, 0
        %v2096 = vsel %vm2091, %v2086, 0
        %2098 = vmatprep.subr.bf16.mxu0 0
        %2099 = vmatpush1.bf16.msra.mxu0 0
        %2100 = vmatprep.subr.bf16.mxu0 0
        %2101 = vmatpush1.bf16.msra.mxu0 0
        %2102 = vmatprep.subr.bf16.mxu0 0
        %2103 = vmatpush1.bf16.msra.mxu0 0
        %2104 = vmatprep.subr.bf16.mxu0 0
        %2105 = vmatpush1.bf16.msra.mxu0 0
        %2106 = vmatprep.subr.bf16.mxu0 0
        %2107 = vmatpush1.bf16.msra.mxu0 0
        %2108 = vmatprep.subr.bf16.mxu0 0
        %2109 = vmatpush1.bf16.msra.mxu0 0
        %2110 = vmatprep.subr.bf16.mxu0 0
        %2111 = vmatpush1.bf16.msra.mxu0 0
        %2112 = vmatprep.subr.bf16.mxu0 %v2096
        %2113 = vmatpush1.bf16.msra.mxu0 %v2093
        %2114 = vmatprep.subr.bf16.mxu0 0
        %2115 = vmatpush2.bf16.msra.mxu0 0
        %2116 = vmatprep.subr.bf16.mxu0 0
        %2117 = vmatpush2.bf16.msra.mxu0 0
        %2118 = vmatprep.subr.bf16.mxu0 0
        %2119 = vmatpush2.bf16.msra.mxu0 0
        %2120 = vmatprep.subr.bf16.mxu0 0
        %2121 = vmatpush2.bf16.msra.mxu0 0
        %2122 = vmatprep.subr.bf16.mxu0 0
        %2123 = vmatpush2.bf16.msra.mxu0 0
        %2124 = vmatprep.subr.bf16.mxu0 0
        %2125 = vmatpush2.bf16.msra.mxu0 0
        %2126 = vmatprep.subr.bf16.mxu0 0
        %2127 = vmatpush2.bf16.msra.mxu0 0
        %2128 = vmatprep.subr.bf16.mxu0 0
        %2129 = vmatpush2.bf16.msra.mxu0 0
        %2130 = vmatprep.mubr.bf16.mxu0 0
        %2131 = vmatmul.mubr.bf16.gmra.mxu0 %v2089
        %v2132 = vpop.f32.mrf.mxu0
        %v2133 = vadd.f32 0.0, %v2132
        %v2134 = vpop.f32.mrf.mxu0
        %v2135 = vadd.f32 0.0, %v2134
        %v2136 = vpop.f32.mrf.mxu0
        %v2137 = vpop.f32.mrf.mxu0
        %2138 = vdwg.mxu0
        %v2139 = vpack.c.bf16 %v2133, %v2133
        %v2140 = vpack.c.bf16 %v2135, %v2135
        %v2141 = vld [vmem:[%s8] sm:$0xf]
        %v2142 = vld [vmem:[%s8 + $0x4] sm:$0xf]
        %v2143 = vld [vmem:[%s8 + $0x8] sm:$0xf]
        %v2144 = vld [vmem:[%s8 + $0xc] sm:$0xf]
        %v2145 = vld [vmem:[%s8 + $0x10] sm:$0xf]
        %v2146 = vld [vmem:[%s8 + $0x14] sm:$0xf]
        %v2147 = vld [vmem:[%s8 + $0x18] sm:$0xf]
        %v2148 = vld [vmem:[%s8 + $0x1c] sm:$0xf]
        %v2149 = vld [vmem:[%s8 + $0x20] sm:$0xf]
        %v2150 = vld [vmem:[%s8 + $0x24] sm:$0xf]
        %v2151 = vld [vmem:[%s8 + $0x28] sm:$0xf]
        %v2152 = vld [vmem:[%s8 + $0x2c] sm:$0xf]
        %v2153 = vld [vmem:[%s8 + $0x30] sm:$0xf]
        %v2154 = vld [vmem:[%s8 + $0x34] sm:$0xf]
        %v2155 = vld [vmem:[%s8 + $0x38] sm:$0xf]
        %v2156 = vld [vmem:[%s8 + $0x3c] sm:$0xf]
        %v2157 = vld [vmem:[%s8 + $0x40] sm:$0xf]
        %v2158 = vld [vmem:[%s8 + $0x44] sm:$0xf]
        %v2159 = vld [vmem:[%s8 + $0x48] sm:$0xf]
        %v2160 = vld [vmem:[%s8 + $0x4c] sm:$0xf]
        %v2181 = vunpack.c.l.b16 %v2141
        %v2182 = vunpack.c.l.b16 %v2142
        %v2183 = vunpack.c.l.b16 %v2143
        %v2184 = vunpack.c.l.b16 %v2144
        %v2185 = vunpack.c.l.b16 %v2145
        %v2186 = vunpack.c.l.b16 %v2146
        %v2187 = vunpack.c.l.b16 %v2147
        %v2188 = vunpack.c.l.b16 %v2148
        %v2189 = vunpack.c.l.b16 %v2149
        %v2190 = vunpack.c.l.b16 %v2150
        %v2191 = vunpack.c.l.b16 %v2151
        %v2192 = vunpack.c.l.b16 %v2152
        %v2193 = vunpack.c.l.b16 %v2153
        %v2194 = vunpack.c.l.b16 %v2154
        %v2195 = vunpack.c.l.b16 %v2155
        %v2196 = vunpack.c.l.b16 %v2156
        %v2197 = vunpack.c.l.b16 %v2157
        %v2198 = vunpack.c.l.b16 %v2158
        %v2199 = vunpack.c.l.b16 %v2159
        %v2200 = vunpack.c.l.b16 %v2160
        %v2201 = vpack.c.b16 %v2182, %v2181
        %v2202 = vpack.c.b16 %v2184, %v2183
        %v2203 = vpack.c.b16 %v2186, %v2185
        %v2204 = vpack.c.b16 %v2188, %v2187
        %v2205 = vpack.c.b16 %v2190, %v2189
        %v2206 = vpack.c.b16 %v2192, %v2191
        %v2207 = vpack.c.b16 %v2194, %v2193
        %v2208 = vpack.c.b16 %v2196, %v2195
        %v2209 = vpack.c.b16 %v2198, %v2197
        %v2210 = vpack.c.b16 %v2200, %v2199
        %vm2221 = vcmask 261120
        %v2223 = vsel %vm2221, %v2140, 0
        %2225 = vmatprep.subr.bf16.mxu0 0
        %2226 = vmatpush1.bf16.msra.mxu0 %v2208
        %2227 = vmatprep.subr.bf16.mxu0 0
        %2228 = vmatpush1.bf16.msra.mxu0 %v2207
        %2229 = vmatprep.subr.bf16.mxu0 0
        %2230 = vmatpush1.bf16.msra.mxu0 %v2206
        %2231 = vmatprep.subr.bf16.mxu0 0
        %2232 = vmatpush1.bf16.msra.mxu0 %v2205
        %2233 = vmatprep.subr.bf16.mxu0 0
        %2234 = vmatpush1.bf16.msra.mxu0 %v2204
        %2235 = vmatprep.subr.bf16.mxu0 0
        %2236 = vmatpush1.bf16.msra.mxu0 %v2203
        %2237 = vmatprep.subr.bf16.mxu0 0
        %2238 = vmatpush1.bf16.msra.mxu0 %v2202
        %2239 = vmatprep.subr.bf16.mxu0 0
        %2240 = vmatpush1.bf16.msra.mxu0 %v2201
        %2241 = vmatprep.subr.bf16.mxu0 0
        %2242 = vmatpush2.bf16.msra.mxu0 0
        %2243 = vmatprep.subr.bf16.mxu0 0
        %2244 = vmatpush2.bf16.msra.mxu0 0
        %2245 = vmatprep.subr.bf16.mxu0 0
        %2246 = vmatpush2.bf16.msra.mxu0 0
        %2247 = vmatprep.subr.bf16.mxu0 0
        %2248 = vmatpush2.bf16.msra.mxu0 0
        %2249 = vmatprep.subr.bf16.mxu0 0
        %2250 = vmatpush2.bf16.msra.mxu0 0
        %2251 = vmatprep.subr.bf16.mxu0 0
        %2252 = vmatpush2.bf16.msra.mxu0 0
        %2253 = vmatprep.subr.bf16.mxu0 0
        %2254 = vmatpush2.bf16.msra.mxu0 %v2210
        %2255 = vmatprep.subr.bf16.mxu0 0
        %2256 = vmatpush2.bf16.msra.mxu0 %v2209
        %2257 = vmatprep.mubr.bf16.mxu0 %v2223
        %2258 = vmatmul.mubr.bf16.gmra.mxu0 %v2139
        %v2259 = vpop.f32.mrf.mxu0
        %v2260 = vadd.f32 0.0, %v2259
        %v2261 = vpop.f32.mrf.mxu0
        %v2262 = vpop.f32.mrf.mxu0
        %v2263 = vpop.f32.mrf.mxu0
        %2264 = vdwg.mxu0
        %v2265 = vpack.c.bf16 %v2260, %v2260
        %v2266 = vld [vmem:[%s9] sm:$0xf]
        %v2267 = vld [vmem:[%s9 + $0x4] sm:$0xf]
        %v2268 = vld [vmem:[%s9 + $0x8] sm:$0xf]
        %v2269 = vld [vmem:[%s9 + $0xc] sm:$0xf]
        %v2270 = vld [vmem:[%s9 + $0x10] sm:$0xf]
        %v2271 = vld [vmem:[%s9 + $0x14] sm:$0xf]
        %v2272 = vld [vmem:[%s9 + $0x18] sm:$0xf]
        %v2273 = vld [vmem:[%s9 + $0x1c] sm:$0xf]
        %v2274 = vld [vmem:[%s9 + $0x20] sm:$0xf]
        %v2275 = vld [vmem:[%s9 + $0x24] sm:$0xf]
        %s2276 = scalar_lea.vmem %s9, 40
        %v2277 = vld [vmem:[%s2276] sm:$0xf]
        %v2278 = vld [vmem:[%s2276 + $0x4] sm:$0xf]
        %v2279 = vld [vmem:[%s2276 + $0x8] sm:$0xf]
        %v2280 = vld [vmem:[%s2276 + $0xc] sm:$0xf]
        %v2281 = vld [vmem:[%s2276 + $0x10] sm:$0xf]
        %v2282 = vld [vmem:[%s2276 + $0x14] sm:$0xf]
        %v2283 = vld [vmem:[%s2276 + $0x18] sm:$0xf]
        %v2284 = vld [vmem:[%s2276 + $0x1c] sm:$0xf]
        %v2285 = vld [vmem:[%s2276 + $0x20] sm:$0xf]
        %v2286 = vld [vmem:[%s2276 + $0x24] sm:$0xf]
        %v2288 = vshrl.u32 %v2265, 16
        %v2300 = vunpack.c.l.b16 %v2277
        %v2301 = vunpack.c.l.b16 %v2278
        %v2302 = vunpack.c.l.b16 %v2279
        %v2303 = vunpack.c.l.b16 %v2280
        %v2304 = vunpack.c.l.b16 %v2281
        %v2305 = vunpack.c.l.b16 %v2282
        %v2306 = vunpack.c.l.b16 %v2283
        %v2307 = vunpack.c.l.b16 %v2284
        %v2308 = vunpack.c.l.b16 %v2285
        %v2309 = vunpack.c.l.b16 %v2286
        %v2310 = vpack.c.b16 %v2301, %v2300
        %v2311 = vpack.c.b16 %v2303, %v2302
        %v2312 = vpack.c.b16 %v2305, %v2304
        %v2313 = vpack.c.b16 %v2307, %v2306
        %v2314 = vpack.c.b16 %v2309, %v2308
        %vm2320 = vcmask 654336
        %v2322 = vsel %vm2320, %v2288, 0
        %2324 = vmatprep.subr.bf16.mxu0 0
        %2325 = vmatpush1.bf16.msra.mxu0 0
        %2326 = vmatprep.subr.bf16.mxu0 0
        %2327 = vmatpush1.bf16.msra.mxu0 0
        %2328 = vmatprep.subr.bf16.mxu0 0
        %2329 = vmatpush1.bf16.msra.mxu0 0
        %2330 = vmatprep.subr.bf16.mxu0 0
        %2331 = vmatpush1.bf16.msra.mxu0 %v2314
        %2332 = vmatprep.subr.bf16.mxu0 0
        %2333 = vmatpush1.bf16.msra.mxu0 %v2313
        %2334 = vmatprep.subr.bf16.mxu0 0
        %2335 = vmatpush1.bf16.msra.mxu0 %v2312
        %2336 = vmatprep.subr.bf16.mxu0 0
        %2337 = vmatpush1.bf16.msra.mxu0 %v2311
        %2338 = vmatprep.subr.bf16.mxu0 0
        %2339 = vmatpush1.bf16.msra.mxu0 %v2310
        %2340 = vmatprep.subr.bf16.mxu0 0
        %2341 = vmatpush2.bf16.msra.mxu0 0
        %2342 = vmatprep.subr.bf16.mxu0 0
        %2343 = vmatpush2.bf16.msra.mxu0 0
        %2344 = vmatprep.subr.bf16.mxu0 0
        %2345 = vmatpush2.bf16.msra.mxu0 0
        %2346 = vmatprep.subr.bf16.mxu0 0
        %2347 = vmatpush2.bf16.msra.mxu0 0
        %2348 = vmatprep.subr.bf16.mxu0 0
        %2349 = vmatpush2.bf16.msra.mxu0 0
        %2350 = vmatprep.subr.bf16.mxu0 0
        %2351 = vmatpush2.bf16.msra.mxu0 0
        %2352 = vmatprep.subr.bf16.mxu0 0
        %2353 = vmatpush2.bf16.msra.mxu0 0
        %2354 = vmatprep.subr.bf16.mxu0 0
        %2355 = vmatpush2.bf16.msra.mxu0 0
        %2356 = vmatprep.mubr.bf16.mxu0 0
        %2357 = vmatmul.mubr.bf16.gmra.mxu0 %v2322
        %v2358 = vpop.f32.mrf.mxu0
        %v2359 = vadd.f32 0.0, %v2358
        %v2360 = vpop.f32.mrf.mxu0
        %v2361 = vpop.f32.mrf.mxu0
        %v2362 = vpop.f32.mrf.mxu0
        %2363 = vdwg.mxu0
        %v2374 = vunpack.c.l.b16 %v2266
        %v2375 = vunpack.c.l.b16 %v2267
        %v2376 = vunpack.c.l.b16 %v2268
        %v2377 = vunpack.c.l.b16 %v2269
        %v2378 = vunpack.c.l.b16 %v2270
        %v2379 = vunpack.c.l.b16 %v2271
        %v2380 = vunpack.c.l.b16 %v2272
        %v2381 = vunpack.c.l.b16 %v2273
        %v2382 = vunpack.c.l.b16 %v2274
        %v2383 = vunpack.c.l.b16 %v2275
        %v2384 = vpack.c.b16 %v2375, %v2374
        %v2385 = vpack.c.b16 %v2377, %v2376
        %v2386 = vpack.c.b16 %v2379, %v2378
        %v2387 = vpack.c.b16 %v2381, %v2380
        %v2388 = vpack.c.b16 %v2383, %v2382
        %v2394 = vsel %vm2320, %v2265, 0
        %2396 = vmatprep.subr.bf16.mxu0 0
        %2397 = vmatpush1.bf16.msra.mxu0 0
        %2398 = vmatprep.subr.bf16.mxu0 0
        %2399 = vmatpush1.bf16.msra.mxu0 0
        %2400 = vmatprep.subr.bf16.mxu0 0
        %2401 = vmatpush1.bf16.msra.mxu0 0
        %2402 = vmatprep.subr.bf16.mxu0 0
        %2403 = vmatpush1.bf16.msra.mxu0 %v2388
        %2404 = vmatprep.subr.bf16.mxu0 0
        %2405 = vmatpush1.bf16.msra.mxu0 %v2387
        %2406 = vmatprep.subr.bf16.mxu0 0
        %2407 = vmatpush1.bf16.msra.mxu0 %v2386
        %2408 = vmatprep.subr.bf16.mxu0 0
        %2409 = vmatpush1.bf16.msra.mxu0 %v2385
        %2410 = vmatprep.subr.bf16.mxu0 0
        %2411 = vmatpush1.bf16.msra.mxu0 %v2384
        %2412 = vmatprep.subr.bf16.mxu0 0
        %2413 = vmatpush2.bf16.msra.mxu0 0
        %2414 = vmatprep.subr.bf16.mxu0 0
        %2415 = vmatpush2.bf16.msra.mxu0 0
        %2416 = vmatprep.subr.bf16.mxu0 0
        %2417 = vmatpush2.bf16.msra.mxu0 0
        %2418 = vmatprep.subr.bf16.mxu0 0
        %2419 = vmatpush2.bf16.msra.mxu0 0
        %2420 = vmatprep.subr.bf16.mxu0 0
        %2421 = vmatpush2.bf16.msra.mxu0 0
        %2422 = vmatprep.subr.bf16.mxu0 0
        %2423 = vmatpush2.bf16.msra.mxu0 0
        %2424 = vmatprep.subr.bf16.mxu0 0
        %2425 = vmatpush2.bf16.msra.mxu0 0
        %2426 = vmatprep.subr.bf16.mxu0 0
        %2427 = vmatpush2.bf16.msra.mxu0 0
        %2428 = vmatprep.mubr.bf16.mxu0 0
        %2429 = vmatmul.mubr.bf16.gmra.mxu0 %v2394
        %v2430 = vpop.f32.mrf.mxu0
        %v2431 = vadd.f32 %v2359, %v2430
        %v2432 = vpop.f32.mrf.mxu0
        %v2433 = vpop.f32.mrf.mxu0
        %v2434 = vpop.f32.mrf.mxu0
        %2435 = vdwg.mxu0
        %s2436 = scalar_lea.vmem %s9, 80
        %v2437 = vld [vmem:[%s2436] sm:$0xf]
        %v2438 = vld [vmem:[%s2436 + $0x4] sm:$0xf]
        %v2439 = vld [vmem:[%s2436 + $0x8] sm:$0xf]
        %v2440 = vld [vmem:[%s2436 + $0xc] sm:$0xf]
        %v2441 = vld [vmem:[%s2436 + $0x10] sm:$0xf]
        %v2442 = vld [vmem:[%s2436 + $0x14] sm:$0xf]
        %v2443 = vld [vmem:[%s2436 + $0x18] sm:$0xf]
        %v2444 = vld [vmem:[%s2436 + $0x1c] sm:$0xf]
        %v2445 = vld [vmem:[%s2436 + $0x20] sm:$0xf]
        %v2446 = vld [vmem:[%s2436 + $0x24] sm:$0xf]
        %v2448 = vrot.slane %v2265, 1
        %v2459 = vunpack.c.l.b16 %v2437
        %v2460 = vunpack.c.l.b16 %v2438
        %v2461 = vunpack.c.l.b16 %v2439
        %v2462 = vunpack.c.l.b16 %v2440
        %v2463 = vunpack.c.l.b16 %v2441
        %v2464 = vunpack.c.l.b16 %v2442
        %v2465 = vunpack.c.l.b16 %v2443
        %v2466 = vunpack.c.l.b16 %v2444
        %v2467 = vunpack.c.l.b16 %v2445
        %v2468 = vunpack.c.l.b16 %v2446
        %v2469 = vpack.c.b16 %v2460, %v2459
        %v2470 = vpack.c.b16 %v2462, %v2461
        %v2471 = vpack.c.b16 %v2464, %v2463
        %v2472 = vpack.c.b16 %v2466, %v2465
        %v2473 = vpack.c.b16 %v2468, %v2467
        %v2480 = vsel %vm2320, %v2448, 0
        %2482 = vmatprep.subr.bf16.mxu0 0
        %2483 = vmatpush1.bf16.msra.mxu0 0
        %2484 = vmatprep.subr.bf16.mxu0 0
        %2485 = vmatpush1.bf16.msra.mxu0 0
        %2486 = vmatprep.subr.bf16.mxu0 0
        %2487 = vmatpush1.bf16.msra.mxu0 0
        %2488 = vmatprep.subr.bf16.mxu0 0
        %2489 = vmatpush1.bf16.msra.mxu0 %v2473
        %2490 = vmatprep.subr.bf16.mxu0 0
        %2491 = vmatpush1.bf16.msra.mxu0 %v2472
        %2492 = vmatprep.subr.bf16.mxu0 0
        %2493 = vmatpush1.bf16.msra.mxu0 %v2471
        %2494 = vmatprep.subr.bf16.mxu0 0
        %2495 = vmatpush1.bf16.msra.mxu0 %v2470
        %2496 = vmatprep.subr.bf16.mxu0 0
        %2497 = vmatpush1.bf16.msra.mxu0 %v2469
        %2498 = vmatprep.subr.bf16.mxu0 0
        %2499 = vmatpush2.bf16.msra.mxu0 0
        %2500 = vmatprep.subr.bf16.mxu0 0
        %2501 = vmatpush2.bf16.msra.mxu0 0
        %2502 = vmatprep.subr.bf16.mxu0 0
        %2503 = vmatpush2.bf16.msra.mxu0 0
        %2504 = vmatprep.subr.bf16.mxu0 0
        %2505 = vmatpush2.bf16.msra.mxu0 0
        %2506 = vmatprep.subr.bf16.mxu0 0
        %2507 = vmatpush2.bf16.msra.mxu0 0
        %2508 = vmatprep.subr.bf16.mxu0 0
        %2509 = vmatpush2.bf16.msra.mxu0 0
        %2510 = vmatprep.subr.bf16.mxu0 0
        %2511 = vmatpush2.bf16.msra.mxu0 0
        %2512 = vmatprep.subr.bf16.mxu0 0
        %2513 = vmatpush2.bf16.msra.mxu0 0
        %2514 = vmatprep.mubr.bf16.mxu0 0
        %2515 = vmatmul.mubr.bf16.gmra.mxu0 %v2480
        %v2516 = vpop.f32.mrf.mxu0
        %v2517 = vadd.f32 0.0, %v2516
        %v2518 = vpop.f32.mrf.mxu0
        %v2519 = vpop.f32.mrf.mxu0
        %v2520 = vpop.f32.mrf.mxu0
        %2521 = vdwg.mxu0
        %v2522 = vadd.f32 %v2431, %v2517
        %s2523 = scalar_lea.vmem %s9, 120
        %v2524 = vld [vmem:[%s2523] sm:$0xf]
        %v2525 = vld [vmem:[%s2523 + $0x4] sm:$0xf]
        %v2526 = vld [vmem:[%s2523 + $0x8] sm:$0xf]
        %v2527 = vld [vmem:[%s2523 + $0xc] sm:$0xf]
        %v2528 = vld [vmem:[%s2523 + $0x10] sm:$0xf]
        %v2529 = vld [vmem:[%s2523 + $0x14] sm:$0xf]
        %v2530 = vld [vmem:[%s2523 + $0x18] sm:$0xf]
        %v2531 = vld [vmem:[%s2523 + $0x1c] sm:$0xf]
        %v2532 = vld [vmem:[%s2523 + $0x20] sm:$0xf]
        %v2533 = vld [vmem:[%s2523 + $0x24] sm:$0xf]
        %v2534 = vrot.slane %v2288, 1
        %v2545 = vunpack.c.l.b16 %v2524
        %v2546 = vunpack.c.l.b16 %v2525
        %v2547 = vunpack.c.l.b16 %v2526
        %v2548 = vunpack.c.l.b16 %v2527
        %v2549 = vunpack.c.l.b16 %v2528
        %v2550 = vunpack.c.l.b16 %v2529
        %v2551 = vunpack.c.l.b16 %v2530
        %v2552 = vunpack.c.l.b16 %v2531
        %v2553 = vunpack.c.l.b16 %v2532
        %v2554 = vunpack.c.l.b16 %v2533
        %v2555 = vpack.c.b16 %v2546, %v2545
        %v2556 = vpack.c.b16 %v2548, %v2547
        %v2557 = vpack.c.b16 %v2550, %v2549
        %v2558 = vpack.c.b16 %v2552, %v2551
        %v2559 = vpack.c.b16 %v2554, %v2553
        %v2566 = vsel %vm2320, %v2534, 0
        %2568 = vmatprep.subr.bf16.mxu0 0
        %2569 = vmatpush1.bf16.msra.mxu0 0
        %2570 = vmatprep.subr.bf16.mxu0 0
        %2571 = vmatpush1.bf16.msra.mxu0 0
        %2572 = vmatprep.subr.bf16.mxu0 0
        %2573 = vmatpush1.bf16.msra.mxu0 0
        %2574 = vmatprep.subr.bf16.mxu0 0
        %2575 = vmatpush1.bf16.msra.mxu0 %v2559
        %2576 = vmatprep.subr.bf16.mxu0 0
        %2577 = vmatpush1.bf16.msra.mxu0 %v2558
        %2578 = vmatprep.subr.bf16.mxu0 0
        %2579 = vmatpush1.bf16.msra.mxu0 %v2557
        %2580 = vmatprep.subr.bf16.mxu0 0
        %2581 = vmatpush1.bf16.msra.mxu0 %v2556
        %2582 = vmatprep.subr.bf16.mxu0 0
        %2583 = vmatpush1.bf16.msra.mxu0 %v2555
        %2584 = vmatprep.subr.bf16.mxu0 0
        %2585 = vmatpush2.bf16.msra.mxu0 0
        %2586 = vmatprep.subr.bf16.mxu0 0
        %2587 = vmatpush2.bf16.msra.mxu0 0
        %2588 = vmatprep.subr.bf16.mxu0 0
        %2589 = vmatpush2.bf16.msra.mxu0 0
        %2590 = vmatprep.subr.bf16.mxu0 0
        %2591 = vmatpush2.bf16.msra.mxu0 0
        %2592 = vmatprep.subr.bf16.mxu0 0
        %2593 = vmatpush2.bf16.msra.mxu0 0
        %2594 = vmatprep.subr.bf16.mxu0 0
        %2595 = vmatpush2.bf16.msra.mxu0 0
        %2596 = vmatprep.subr.bf16.mxu0 0
        %2597 = vmatpush2.bf16.msra.mxu0 0
        %2598 = vmatprep.subr.bf16.mxu0 0
        %2599 = vmatpush2.bf16.msra.mxu0 0
        %2600 = vmatprep.mubr.bf16.mxu0 0
        %2601 = vmatmul.mubr.bf16.gmra.mxu0 %v2566
        %v2602 = vpop.f32.mrf.mxu0
        %v2603 = vadd.f32 0.0, %v2602
        %v2604 = vpop.f32.mrf.mxu0
        %v2605 = vpop.f32.mrf.mxu0
        %v2606 = vpop.f32.mrf.mxu0
        %2607 = vdwg.mxu0
        %v2608 = vadd.f32 %v2522, %v2603
        %s2609 = scalar_lea.vmem %s9, 160
        %v2610 = vld [vmem:[%s2609] sm:$0xf]
        %v2611 = vld [vmem:[%s2609 + $0x4] sm:$0xf]
        %v2612 = vld [vmem:[%s2609 + $0x8] sm:$0xf]
        %v2613 = vld [vmem:[%s2609 + $0xc] sm:$0xf]
        %v2614 = vld [vmem:[%s2609 + $0x10] sm:$0xf]
        %v2615 = vld [vmem:[%s2609 + $0x14] sm:$0xf]
        %v2616 = vld [vmem:[%s2609 + $0x18] sm:$0xf]
        %v2617 = vld [vmem:[%s2609 + $0x1c] sm:$0xf]
        %v2618 = vld [vmem:[%s2609 + $0x20] sm:$0xf]
        %v2619 = vld [vmem:[%s2609 + $0x24] sm:$0xf]
        %v2620 = vrot.slane %v2265, 2
        %v2631 = vunpack.c.l.b16 %v2610
        %v2632 = vunpack.c.l.b16 %v2611
        %v2633 = vunpack.c.l.b16 %v2612
        %v2634 = vunpack.c.l.b16 %v2613
        %v2635 = vunpack.c.l.b16 %v2614
        %v2636 = vunpack.c.l.b16 %v2615
        %v2637 = vunpack.c.l.b16 %v2616
        %v2638 = vunpack.c.l.b16 %v2617
        %v2639 = vunpack.c.l.b16 %v2618
        %v2640 = vunpack.c.l.b16 %v2619
        %v2641 = vpack.c.b16 %v2632, %v2631
        %v2642 = vpack.c.b16 %v2634, %v2633
        %v2643 = vpack.c.b16 %v2636, %v2635
        %v2644 = vpack.c.b16 %v2638, %v2637
        %v2645 = vpack.c.b16 %v2640, %v2639
        %v2652 = vsel %vm2320, %v2620, 0
        %2654 = vmatprep.subr.bf16.mxu0 0
        %2655 = vmatpush1.bf16.msra.mxu0 0
        %2656 = vmatprep.subr.bf16.mxu0 0
        %2657 = vmatpush1.bf16.msra.mxu0 0
        %2658 = vmatprep.subr.bf16.mxu0 0
        %2659 = vmatpush1.bf16.msra.mxu0 0
        %2660 = vmatprep.subr.bf16.mxu0 0
        %2661 = vmatpush1.bf16.msra.mxu0 %v2645
        %2662 = vmatprep.subr.bf16.mxu0 0
        %2663 = vmatpush1.bf16.msra.mxu0 %v2644
        %2664 = vmatprep.subr.bf16.mxu0 0
        %2665 = vmatpush1.bf16.msra.mxu0 %v2643
        %2666 = vmatprep.subr.bf16.mxu0 0
        %2667 = vmatpush1.bf16.msra.mxu0 %v2642
        %2668 = vmatprep.subr.bf16.mxu0 0
        %2669 = vmatpush1.bf16.msra.mxu0 %v2641
        %2670 = vmatprep.subr.bf16.mxu0 0
        %2671 = vmatpush2.bf16.msra.mxu0 0
        %2672 = vmatprep.subr.bf16.mxu0 0
        %2673 = vmatpush2.bf16.msra.mxu0 0
        %2674 = vmatprep.subr.bf16.mxu0 0
        %2675 = vmatpush2.bf16.msra.mxu0 0
        %2676 = vmatprep.subr.bf16.mxu0 0
        %2677 = vmatpush2.bf16.msra.mxu0 0
        %2678 = vmatprep.subr.bf16.mxu0 0
        %2679 = vmatpush2.bf16.msra.mxu0 0
        %2680 = vmatprep.subr.bf16.mxu0 0
        %2681 = vmatpush2.bf16.msra.mxu0 0
        %2682 = vmatprep.subr.bf16.mxu0 0
        %2683 = vmatpush2.bf16.msra.mxu0 0
        %2684 = vmatprep.subr.bf16.mxu0 0
        %2685 = vmatpush2.bf16.msra.mxu0 0
        %2686 = vmatprep.mubr.bf16.mxu0 0
        %2687 = vmatmul.mubr.bf16.gmra.mxu0 %v2652
        %v2688 = vpop.f32.mrf.mxu0
        %v2689 = vadd.f32 0.0, %v2688
        %v2690 = vpop.f32.mrf.mxu0
        %v2691 = vpop.f32.mrf.mxu0
        %v2692 = vpop.f32.mrf.mxu0
        %2693 = vdwg.mxu0
        %v2694 = vadd.f32 %v2608, %v2689
        %v2695 = vld [vmem:[%s10] sm:$0x1]
        %v2696 = vadd.f32 %v2694, %v2695
        %v2697 = vmax.f32 %v2696, 0.0
        %v2698 = vpack.c.bf16 %v2697, %v2697
        %v2699 = vld [vmem:[%s11] sm:$0xf]
        %v2700 = vld [vmem:[%s11 + $0x4] sm:$0xf]
        %v2701 = vld [vmem:[%s11 + $0x8] sm:$0xf]
        %v2702 = vld [vmem:[%s11 + $0xc] sm:$0xf]
        %v2703 = vld [vmem:[%s11 + $0x10] sm:$0xf]
        %v2704 = vld [vmem:[%s11 + $0x14] sm:$0xf]
        %v2705 = vld [vmem:[%s11 + $0x18] sm:$0xf]
        %v2706 = vld [vmem:[%s11 + $0x1c] sm:$0xf]
        %v2707 = vld [vmem:[%s11 + $0x20] sm:$0xf]
        %v2708 = vld [vmem:[%s11 + $0x24] sm:$0xf]
        %v2709 = vld [vmem:[%s11 + $0x28] sm:$0xf]
        %v2710 = vld [vmem:[%s11 + $0x2c] sm:$0xf]
        %v2711 = vld [vmem:[%s11 + $0x30] sm:$0xf]
        %v2712 = vld [vmem:[%s11 + $0x34] sm:$0xf]
        %v2713 = vld [vmem:[%s11 + $0x38] sm:$0xf]
        %v2714 = vld [vmem:[%s12] sm:$0x1]
        %v2730 = vunpack.c.l.b16 %v2699
        %v2731 = vunpack.c.l.b16 %v2700
        %v2732 = vunpack.c.l.b16 %v2701
        %v2733 = vunpack.c.l.b16 %v2702
        %v2734 = vunpack.c.l.b16 %v2703
        %v2735 = vunpack.c.l.b16 %v2704
        %v2736 = vunpack.c.l.b16 %v2705
        %v2737 = vunpack.c.l.b16 %v2706
        %v2738 = vunpack.c.l.b16 %v2707
        %v2739 = vunpack.c.l.b16 %v2708
        %v2740 = vunpack.c.l.b16 %v2709
        %v2741 = vunpack.c.l.b16 %v2710
        %v2742 = vunpack.c.l.b16 %v2711
        %v2743 = vunpack.c.l.b16 %v2712
        %v2744 = vunpack.c.l.b16 %v2713
        %v2745 = vpack.c.b16 %v2731, %v2730
        %v2746 = vpack.c.b16 %v2733, %v2732
        %v2747 = vpack.c.b16 %v2735, %v2734
        %v2748 = vpack.c.b16 %v2737, %v2736
        %v2749 = vpack.c.b16 %v2739, %v2738
        %v2750 = vpack.c.b16 %v2741, %v2740
        %v2751 = vpack.c.b16 %v2743, %v2742
        %v2752 = vpack.c.b16 %v2744, %v2744
        %vm2760 = vcmask 982016
        %v2762 = vsel %vm2760, %v2698, 0
        %v2765 = vsel %vm1398, %v2752, 0
        %2767 = vmatprep.subr.bf16.mxu0 0
        %2768 = vmatpush1.bf16.msra.mxu0 %v2765
        %2769 = vmatprep.subr.bf16.mxu0 0
        %2770 = vmatpush1.bf16.msra.mxu0 %v2751
        %2771 = vmatprep.subr.bf16.mxu0 0
        %2772 = vmatpush1.bf16.msra.mxu0 %v2750
        %2773 = vmatprep.subr.bf16.mxu0 0
        %2774 = vmatpush1.bf16.msra.mxu0 %v2749
        %2775 = vmatprep.subr.bf16.mxu0 0
        %2776 = vmatpush1.bf16.msra.mxu0 %v2748
        %2777 = vmatprep.subr.bf16.mxu0 0
        %2778 = vmatpush1.bf16.msra.mxu0 %v2747
        %2779 = vmatprep.subr.bf16.mxu0 0
        %2780 = vmatpush1.bf16.msra.mxu0 %v2746
        %2781 = vmatprep.subr.bf16.mxu0 0
        %2782 = vmatpush1.bf16.msra.mxu0 %v2745
        %2783 = vmatprep.subr.bf16.mxu0 0
        %2784 = vmatpush2.bf16.msra.mxu0 0
        %2785 = vmatprep.subr.bf16.mxu0 0
        %2786 = vmatpush2.bf16.msra.mxu0 0
        %2787 = vmatprep.subr.bf16.mxu0 0
        %2788 = vmatpush2.bf16.msra.mxu0 0
        %2789 = vmatprep.subr.bf16.mxu0 0
        %2790 = vmatpush2.bf16.msra.mxu0 0
        %2791 = vmatprep.subr.bf16.mxu0 0
        %2792 = vmatpush2.bf16.msra.mxu0 0
        %2793 = vmatprep.subr.bf16.mxu0 0
        %2794 = vmatpush2.bf16.msra.mxu0 0
        %2795 = vmatprep.subr.bf16.mxu0 0
        %2796 = vmatpush2.bf16.msra.mxu0 0
        %2797 = vmatprep.subr.bf16.mxu0 0
        %2798 = vmatpush2.bf16.msra.mxu0 0
        %2799 = vmatprep.mubr.bf16.mxu0 0
        %2800 = vmatmul.mubr.bf16.gmra.mxu0 %v2762
        %v2801 = vpop.f32.mrf.mxu0
        %v2802 = vadd.f32 %v2714, %v2801
        %v2803 = vpop.f32.mrf.mxu0
        %v2804 = vpop.f32.mrf.mxu0
        %v2805 = vpop.f32.mrf.mxu0
        %2806 = vdwg.mxu0
        %v2807 = vmax.f32 %v2802, 0.0
        %v2808 = vpack.c.bf16 %v2807, %v2807
        %v2809 = vld [vmem:[%s13] sm:$0xf]
        %v2810 = vld [vmem:[%s13 + $0x4] sm:$0xf]
        %v2811 = vld [vmem:[%s13 + $0x8] sm:$0xf]
        %v2812 = vld [vmem:[%s13 + $0xc] sm:$0xf]
        %v2813 = vld [vmem:[%s13 + $0x10] sm:$0xf]
        %v2814 = vld [vmem:[%s13 + $0x14] sm:$0xf]
        %v2815 = vld [vmem:[%s13 + $0x18] sm:$0xf]
        %v2816 = vld [vmem:[%s13 + $0x1c] sm:$0xf]
        %v2817 = vld [vmem:[%s13 + $0x20] sm:$0xf]
        %v2818 = vld [vmem:[%s13 + $0x24] sm:$0xf]
        %v2819 = vld [vmem:[%s13 + $0x28] sm:$0x3]
        %v2820 = vld [vmem:[%s14] sm:$0x1]
        %v2832 = vunpack.c.l.b16 %v2809
        %v2833 = vunpack.c.l.b16 %v2810
        %v2834 = vunpack.c.l.b16 %v2811
        %v2835 = vunpack.c.l.b16 %v2812
        %v2836 = vunpack.c.l.b16 %v2813
        %v2837 = vunpack.c.l.b16 %v2814
        %v2838 = vunpack.c.l.b16 %v2815
        %v2839 = vunpack.c.l.b16 %v2816
        %v2840 = vunpack.c.l.b16 %v2817
        %v2841 = vunpack.c.l.b16 %v2818
        %v2842 = vunpack.c.l.b16 %v2819
        %v2843 = vpack.c.b16 %v2833, %v2832
        %v2844 = vpack.c.b16 %v2835, %v2834
        %v2845 = vpack.c.b16 %v2837, %v2836
        %v2846 = vpack.c.b16 %v2839, %v2838
        %v2847 = vpack.c.b16 %v2841, %v2840
        %v2848 = vpack.c.b16 %v2842, %v2842
        %v2855 = vsel %vm1529, %v2808, 0
        %v2858 = vsel %vm1533, %v2848, 0
        %2860 = vmatprep.subr.bf16.mxu0 0
        %2861 = vmatpush1.bf16.msra.mxu0 0
        %2862 = vmatprep.subr.bf16.mxu0 0
        %2863 = vmatpush1.bf16.msra.mxu0 0
        %2864 = vmatprep.subr.bf16.mxu0 0
        %2865 = vmatpush1.bf16.msra.mxu0 %v2858
        %2866 = vmatprep.subr.bf16.mxu0 0
        %2867 = vmatpush1.bf16.msra.mxu0 %v2847
        %2868 = vmatprep.subr.bf16.mxu0 0
        %2869 = vmatpush1.bf16.msra.mxu0 %v2846
        %2870 = vmatprep.subr.bf16.mxu0 0
        %2871 = vmatpush1.bf16.msra.mxu0 %v2845
        %2872 = vmatprep.subr.bf16.mxu0 0
        %2873 = vmatpush1.bf16.msra.mxu0 %v2844
        %2874 = vmatprep.subr.bf16.mxu0 0
        %2875 = vmatpush1.bf16.msra.mxu0 %v2843
        %2876 = vmatprep.subr.bf16.mxu0 0
        %2877 = vmatpush2.bf16.msra.mxu0 0
        %2878 = vmatprep.subr.bf16.mxu0 0
        %2879 = vmatpush2.bf16.msra.mxu0 0
        %2880 = vmatprep.subr.bf16.mxu0 0
        %2881 = vmatpush2.bf16.msra.mxu0 0
        %2882 = vmatprep.subr.bf16.mxu0 0
        %2883 = vmatpush2.bf16.msra.mxu0 0
        %2884 = vmatprep.subr.bf16.mxu0 0
        %2885 = vmatpush2.bf16.msra.mxu0 0
        %2886 = vmatprep.subr.bf16.mxu0 0
        %2887 = vmatpush2.bf16.msra.mxu0 0
        %2888 = vmatprep.subr.bf16.mxu0 0
        %2889 = vmatpush2.bf16.msra.mxu0 0
        %2890 = vmatprep.subr.bf16.mxu0 0
        %2891 = vmatpush2.bf16.msra.mxu0 0
        %2892 = vmatprep.mubr.bf16.mxu0 0
        %2893 = vmatmul.mubr.bf16.gmra.mxu0 %v2855
        %v2894 = vpop.f32.mrf.mxu0
        %v2895 = vadd.f32 %v2820, %v2894
        %v2896 = vpop.f32.mrf.mxu0
        %v2897 = vpop.f32.mrf.mxu0
        %v2898 = vpop.f32.mrf.mxu0
        %2899 = vdwg.mxu0
        %vm2900 = vcmask 1040384
        %v2901 = vsel %vm2900, %v2895, -inf
        %2902 = vmax.xlane.f32.xlu0 %v2901
        %v2903 = vpop.xlane.xlu0 %2902
        %v2904 = vsub.f32 %v2895, %v2903
        %v2905 = vmul.f32 %v2904, 1.442695
        %v2906 = vpow.pop %v2905
        %v2907 = vsel %vm2900, %v2906, 0.0
        %2908 = vadd.xlane.f32.xlu0 %v2907
        %v2909 = vpop.xlane.xlu0 %2908
        %v2910 = vrcp.pop %v2909
        %v2911 = vmul.f32 %v2906, %v2910
        %2912 = vst [vmem:[%s486] sm:$0x1] %v2911
        %s2913 = sand.u32 %s357, 1
        %s2914 = scalar_lea.sflag [#allocation3], %s2913
        %s2915 = sand.u32 %s357, 1
        %s2916 = scalar_lea.vmem [#allocation2], %s2915
        // Predicated region
        $region81: #{lenet_avg_pool_forward.1} parent=79 // pred_check
          %p2917 = pneg %p367
        $region82: #{lenet_avg_pool_forward.1} parent=79 // pred_check_branch
          %2919 = sbr.rel (%p2917) target = $region84
        $region83: #{lenet_avg_pool_forward.1} parent=79 // pred_region
          %s2921 = ssub.s32 16, 16
          %2922 = vsyncadd %s2914, %s2921
          %s2923 = smul.addr %s29, 16
          %s2924 = scalar_lea.hbm %s15, %s2923
          %s2926 = sshll.u32 %s2916, 4
          %s2927 = int_to_ptr.vmem [resolvable:$true] %s2926
          %2929 = dma.vmem_to_hbm [thread:$0]  %s2927, 16, %s2924, %s2914
        $region84: #{lenet_avg_pool_forward.1} parent=79 // pred_fallthru
          _
      $region80: #{lenet_avg_pool_forward.1} parent=5 // pred_fallthru
        _
      %p2930 = scmp.le.s32.totalorder 2, %s24
      // Predicated region
      $region85: #{lenet_avg_pool_forward.1} parent=5 // pred_check
        %p2931 = pneg %p2930
      $region86: #{lenet_avg_pool_forward.1} parent=5 // pred_check_branch
        %2933 = sbr.rel (%p2931) target = $region88
      $region87: #{lenet_avg_pool_forward.1} parent=5 // pred_region
        %s2934 = ssub.s32 %s24, 2
        // Predicated region
        $region89: #{lenet_avg_pool_forward.1} parent=87 // pred_check
          %p2935 = pneg %p373
        $region90: #{lenet_avg_pool_forward.1} parent=87 // pred_check_branch
          %2937 = sbr.rel (%p2935) target = $region92
        $region91: #{lenet_avg_pool_forward.1} parent=87 // pred_region
          %s2938 = sand.u32 %s358, 1
          %s2939 = scalar_lea.sflag [#allocation3], %s2938
          %s2940 = sand.u32 %s358, 1
          %s2941 = scalar_lea.vmem [#allocation2], %s2940
          %2942 = dma.done %s2939, 16
        $region92: #{lenet_avg_pool_forward.1} parent=87 // pred_fallthru
          _
      $region88: #{lenet_avg_pool_forward.1} parent=5 // pred_fallthru
        _
    $region6: #{lenet_avg_pool_forward.1} parent=1 // loop_footer
      %s28 = sadd.s32 1, %s24
    $region7: #{lenet_avg_pool_forward.1} parent=1 // loop_footer_branch
      %23 = sbr.rel target = $region3
    $region8: #{lenet_avg_pool_forward.1} parent=1 // loop_exit
      _
    %2943 = vsyncpa [#allocation3], 1
    %s2944 = scalar_lea.sflag [#allocation3], 1
    %2945 = vsyncpa %s2944, 1

</llo_original>
